<compile_context>
chip_gen: v5e
topology: v5e:2x2
jax: 0.10.0
libtpu: 0.0.40
codegen_flags: <defaults>
</compile_context>

<pallas_src>
import functools
import jax
import jax.numpy as jnp
from jax.experimental import pallas as pl
from jax.experimental.pallas import tpu as pltpu


# Set to jnp.bfloat16 on v6e / v7x for higher MXU throughput and half the VMEM
# per block (accumulation stays f32).  Kept f32 here so the numerical check
# against the f32 reference is exact-ish on every chip (incl. v5e).
COMPUTE_DTYPE = jnp.float32

EPS = 1e-3


def _pick_row_tile(total_rows):
    """Largest row tile (mult. of 8) dividing total_rows with >=2 grid steps."""
    for t in (1024, 512, 256, 128, 64, 32, 16, 8):
        if total_rows % t == 0 and total_rows // t >= 2:
            return t
    return total_rows


def _pick_h_tile(h):
    """Row-tile height for the spatial kernels."""
    for t in (8, 4, 2):
        if h % t == 0:
            return t
    return h


# ----------------------------------------------------------------------------
# Kernel 1: fused 1x1 conv(s) (BN scale pre-folded into W) + bias + ReLU.
# Row-tiled matmul: x:(TM, Cin)  w:(Cin, Cout)  b:(1, Cout) -> o:(TM, Cout)
# ----------------------------------------------------------------------------
def _matmul_bias_relu_kernel(x_ref, w_ref, b_ref, o_ref):
    y = jnp.dot(x_ref[...], w_ref[...], preferred_element_type=jnp.float32)
    o_ref[...] = jnp.maximum(y + b_ref[...], 0.0).astype(o_ref.dtype)


def matmul_bias_relu(x_nhwc, w, bias):
    """1x1 conv (+ folded-BN bias) + ReLU as a row-tiled, pipelined matmul."""
    N, H, W, Cin = x_nhwc.shape
    Cout = w.shape[1]
    R = N * H * W
    TM = _pick_row_tile(R)
    x_flat = x_nhwc.reshape(R, Cin).astype(COMPUTE_DTYPE)
    out = pl.pallas_call(
        _matmul_bias_relu_kernel,
        out_shape=jax.ShapeDtypeStruct((R, Cout), jnp.float32),
        grid=(pl.cdiv(R, TM),),
        in_specs=[
            pl.BlockSpec((TM, Cin), lambda i: (i, 0)),
            pl.BlockSpec((Cin, Cout), lambda i: (0, 0)),
            pl.BlockSpec((1, Cout), lambda i: (0, 0)),
        ],
        out_specs=pl.BlockSpec((TM, Cout), lambda i: (i, 0)),
        compiler_params=pltpu.CompilerParams(
            dimension_semantics=("parallel",)),
    )(x_flat, w.astype(COMPUTE_DTYPE),
      bias.reshape(1, Cout).astype(jnp.float32))
    return out.reshape(N, H, W, Cout)


# ----------------------------------------------------------------------------
# Kernel 2: 3x3 conv (stride 1, zero pad 1 applied outside) + bias + ReLU.
# Grid (N, H//TH).  The zero-padded plane is resident in VMEM across the row
# tiles; a width-im2col slab (K = 3*Cin) is built ONCE per batch element, then
# each row tile issues 3 MXU dots (one per kh) with K = 3*Cin.
#   xpad:(1, H+2, W+2, Cin)  w:(3, 3*Cin, Cout)  b:(1, Cout) -> o:(1, TH, W, Cout)
# ----------------------------------------------------------------------------
def _conv3x3_bias_relu_kernel(x_ref, w_ref, b_ref, o_ref, xcol_ref):
    r = pl.program_id(1)
    Cin = x_ref.shape[3]
    TH, W, Cout = o_ref.shape[1], o_ref.shape[2], o_ref.shape[3]

    # Width-im2col once per batch element: concat the 3 width-shifted views
    # along channels -> (Hp, W, 3*Cin) in VMEM scratch.
    @pl.when(r == 0)
    def _():
        xcol_ref[...] = jnp.concatenate(
            [x_ref[0, :, 0:W, :],
             x_ref[0, :, 1:W + 1, :],
             x_ref[0, :, 2:W + 2, :]], axis=-1)

    r0 = pl.multiple_of(r * TH, TH)
    acc = jnp.zeros((TH * W, Cout), jnp.float32)
    for dh in range(3):                       # 3 dots, K = 3*Cin
        patch = xcol_ref[pl.ds(r0 + dh, TH), :, :].reshape(TH * W, 3 * Cin)
        acc = acc + jnp.dot(patch, w_ref[dh],
                            preferred_element_type=jnp.float32)
    y = jnp.maximum(acc + b_ref[...], 0.0)
    o_ref[...] = y.reshape(1, TH, W, Cout).astype(o_ref.dtype)


def conv3x3_bias_relu(x_nhwc, w_hwio_folded, bias):
    N, H, W, Cin = x_nhwc.shape
    Cout = w_hwio_folded.shape[-1]
    TH = _pick_h_tile(H)
    # TODO(synk): this jnp.pad is an extra HBM pass; could be removed by having
    # the producer kernel write into a pre-padded buffer.
    xpad = jnp.pad(x_nhwc.astype(COMPUTE_DTYPE), ((0, 0), (1, 1), (1, 1), (0, 0)))
    Hp, Wp = H + 2, W + 2
    w = w_hwio_folded.reshape(3, 3 * Cin, Cout).astype(COMPUTE_DTYPE)
    return pl.pallas_call(
        _conv3x3_bias_relu_kernel,
        out_shape=jax.ShapeDtypeStruct((N, H, W, Cout), jnp.float32),
        grid=(N, H // TH),
        in_specs=[
            pl.BlockSpec((1, Hp, Wp, Cin), lambda n, r: (n, 0, 0, 0)),
            pl.BlockSpec((3, 3 * Cin, Cout), lambda n, r: (0, 0, 0)),
            pl.BlockSpec((1, Cout), lambda n, r: (0, 0)),
        ],
        out_specs=pl.BlockSpec((1, TH, W, Cout), lambda n, r: (n, r, 0, 0)),
        scratch_shapes=[pltpu.VMEM((Hp, W, 3 * Cin), COMPUTE_DTYPE)],
        compiler_params=pltpu.CompilerParams(
            dimension_semantics=("parallel", "arbitrary")),
    )(xpad, w, bias.reshape(1, Cout).astype(jnp.float32))


# ----------------------------------------------------------------------------
# Kernel 3: MaxPool 3x3/stride1/pad1 (pad=-inf outside) fused with the 1x1
# pool-projection + bias + ReLU.  Separable max: 3-tap along W once per plane
# (into scratch), 3-tap along H per row tile, then one matmul.
# ----------------------------------------------------------------------------
def _maxpool_proj_kernel(x_ref, w_ref, b_ref, o_ref, wmax_ref):
    r = pl.program_id(1)
    Cin = x_ref.shape[3]
    TH, W, Cout = o_ref.shape[1], o_ref.shape[2], o_ref.shape[3]

    @pl.when(r == 0)
    def _():
        wmax_ref[...] = jnp.maximum(
            jnp.maximum(x_ref[0, :, 0:W, :], x_ref[0, :, 1:W + 1, :]),
            x_ref[0, :, 2:W + 2, :])

    r0 = pl.multiple_of(r * TH, TH)
    pooled = jnp.maximum(
        jnp.maximum(wmax_ref[pl.ds(r0, TH), :, :],
                    wmax_ref[pl.ds(r0 + 1, TH), :, :]),
        wmax_ref[pl.ds(r0 + 2, TH), :, :])
    y = jnp.dot(pooled.reshape(TH * W, Cin), w_ref[...],
                preferred_element_type=jnp.float32)
    y = jnp.maximum(y + b_ref[...], 0.0)
    o_ref[...] = y.reshape(1, TH, W, Cout).astype(o_ref.dtype)


def maxpool_proj_bias_relu(x_nhwc, w, bias):
    N, H, W, Cin = x_nhwc.shape
    Cout = w.shape[1]
    TH = _pick_h_tile(H)
    xpad = jnp.pad(x_nhwc.astype(COMPUTE_DTYPE), ((0, 0), (1, 1), (1, 1), (0, 0)),
                   constant_values=-jnp.inf)
    Hp, Wp = H + 2, W + 2
    return pl.pallas_call(
        _maxpool_proj_kernel,
        out_shape=jax.ShapeDtypeStruct((N, H, W, Cout), jnp.float32),
        grid=(N, H // TH),
        in_specs=[
            pl.BlockSpec((1, Hp, Wp, Cin), lambda n, r: (n, 0, 0, 0)),
            pl.BlockSpec((Cin, Cout), lambda n, r: (0, 0)),
            pl.BlockSpec((1, Cout), lambda n, r: (0, 0)),
        ],
        out_specs=pl.BlockSpec((1, TH, W, Cout), lambda n, r: (n, r, 0, 0)),
        scratch_shapes=[pltpu.VMEM((Hp, W, Cin), COMPUTE_DTYPE)],
        compiler_params=pltpu.CompilerParams(
            dimension_semantics=("parallel", "arbitrary")),
    )(xpad, w.astype(COMPUTE_DTYPE), bias.reshape(1, Cout).astype(jnp.float32))


# ----------------------------------------------------------------------------
# Parameter construction (deterministic, mirrors module __init__ shapes)
# ----------------------------------------------------------------------------
def _fold_bn(gamma, beta, mean, var):
    scale = gamma / jnp.sqrt(var + EPS)
    bias = beta - mean * scale
    return scale.astype(jnp.float32), bias.astype(jnp.float32)


def _make_basic_conv(key, cin, cout, ksize):
    kw, kg, kb, km, kv = jax.random.split(key, 5)
    w = 0.1 * jax.random.normal(kw, (ksize, ksize, cin, cout), jnp.float32)  # HWIO
    gamma = 1.0 + 0.1 * jax.random.normal(kg, (cout,), jnp.float32)
    beta = 0.1 * jax.random.normal(kb, (cout,), jnp.float32)
    mean = 0.1 * jax.random.normal(km, (cout,), jnp.float32)
    var = jnp.abs(jax.random.normal(kv, (cout,), jnp.float32)) + 0.5
    scale, bias = _fold_bn(gamma, beta, mean, var)
    return {"w": w, "scale": scale, "bias": bias}


def make_inception_params(key, in_channels, ch1x1, ch3x3red, ch3x3,
                          ch5x5red, ch5x5, pool_proj):
    keys = jax.random.split(key, 6)
    return {
        "b1": _make_basic_conv(keys[0], in_channels, ch1x1, 1),
        "b2a": _make_basic_conv(keys[1], in_channels, ch3x3red, 1),
        "b2b": _make_basic_conv(keys[2], ch3x3red, ch3x3, 3),
        "b3a": _make_basic_conv(keys[3], in_channels, ch5x5red, 1),
        # torchvision Inception "branch3" uses kernel_size=3 (not 5) — kept.
        "b3b": _make_basic_conv(keys[4], ch5x5red, ch5x5, 3),
        "b4": _make_basic_conv(keys[5], in_channels, pool_proj, 1),
    }


# ----------------------------------------------------------------------------
# Inception forward (layout/fold glue in JAX, hot paths in Pallas)
# ----------------------------------------------------------------------------
@jax.jit
def inception_forward(x_nchw, params):
    x = jnp.transpose(x_nchw, (0, 2, 3, 1)).astype(jnp.float32)  # NCHW -> NHWC

    def fold(p):  # fold BN scale into conv weights (bias stays separate)
        return p["w"] * p["scale"], p["bias"]

    w1, b1 = fold(params["b1"])
    w2a, b2a = fold(params["b2a"])
    w2b, b2b = fold(params["b2b"])
    w3a, b3a = fold(params["b3a"])
    w3b, b3b = fold(params["b3b"])
    w4, b4 = fold(params["b4"])

    c1 = w1.shape[-1]
    c2r = w2a.shape[-1]
    c3r = w3a.shape[-1]

    # Fuse the three 1x1 convs that read x into one wide matmul.
    w_fused = jnp.concatenate([w1[0, 0], w2a[0, 0], w3a[0, 0]], axis=1)
    bias_fused = jnp.concatenate([b1, b2a, b3a])
    fused = matmul_bias_relu(x, w_fused, bias_fused)

    branch1 = fused[..., :c1]
    x2 = fused[..., c1:c1 + c2r]
    x3 = fused[..., c1 + c2r:c1 + c2r + c3r]

    branch2 = conv3x3_bias_relu(x2, w2b, b2b)
    branch3 = conv3x3_bias_relu(x3, w3b, b3b)
    branch4 = maxpool_proj_bias_relu(x, w4[0, 0], b4)

    # TODO(synk): branches could write directly into channel slices of one
    # NHWC slab (input_output_aliases) to remove this concat copy.
    out = jnp.concatenate([branch1, branch2, branch3, branch4], axis=-1)
    return jnp.transpose(out, (0, 3, 1, 2))  # NHWC -> NCHW


# ----------------------------------------------------------------------------
# Pure-JAX reference (for correctness check only)
# ----------------------------------------------------------------------------
def _ref_basic_conv(x_nhwc, p, pad):
    y = jax.lax.conv_general_dilated(
        x_nhwc, p["w"], (1, 1), ((pad, pad), (pad, pad)),
        dimension_numbers=("NHWC", "HWIO", "NHWC"))
    y = y * p["scale"] + p["bias"]
    return jnp.maximum(y, 0.0)


def inception_reference(x_nchw, params):
    x = jnp.transpose(x_nchw, (0, 2, 3, 1)).astype(jnp.float32)
    b1 = _ref_basic_conv(x, params["b1"], 0)
    b2 = _ref_basic_conv(_ref_basic_conv(x, params["b2a"], 0), params["b2b"], 1)
    b3 = _ref_basic_conv(_ref_basic_conv(x, params["b3a"], 0), params["b3b"], 1)
    pooled = jax.lax.reduce_window(
        x, -jnp.inf, jax.lax.max, (1, 3, 3, 1), (1, 1, 1, 1),
        ((0, 0), (1, 1), (1, 1), (0, 0)))
    b4 = _ref_basic_conv(pooled, params["b4"], 0)
    out = jnp.concatenate([b1, b2, b3, b4], axis=-1)
    return jnp.transpose(out, (0, 3, 1, 2))


if __name__ == "__main__":
    key = jax.random.PRNGKey(0)
    kx, kp = jax.random.split(key)

    # Inception(in=4, ch1x1=8, ch3x3red=4, ch3x3=8, ch5x5red=4, ch5x5=8, pool_proj=8)
    N, C, H, W = 2, 4, 16, 16
    x = jax.random.normal(kx, (N, C, H, W), jnp.float32)
    params = make_inception_params(kp, C, 8, 4, 8, 4, 8, 8)

    out = jax.block_until_ready(inception_forward(x, params))
    assert out.shape == (N, 8 + 8 + 8 + 8, H, W), out.shape

    ref = jax.block_until_ready(inception_reference(x, params))
    if not jnp.allclose(out, ref, rtol=1e-4, atol=1e-4):
        raise AssertionError("Pallas output mismatch vs JAX reference")

    print("KERNEL_OK")
</pallas_src>

<mosaic_0001>
module attributes {stable_mosaic.version = 11 : i64} {
  func.func @_matmul_bias_relu_kernel(%arg0: i32, %arg1: memref<256x4xf32, #tpu.memory_space<vmem>>, %arg2: memref<4x16xf32, #tpu.memory_space<vmem>>, %arg3: memref<1x16xf32, #tpu.memory_space<vmem>>, %arg4: memref<256x16xf32, #tpu.memory_space<vmem>>) attributes {dimension_semantics = [#tpu.dimension_semantics<parallel>], iteration_bounds = array<i64: 2>, scalar_prefetch = 0 : i64, scratch_operands = 0 : i64, tpu.core_type = #tpu.core_type<tc>, window_params = [{transform_indices = @transform_0, window_bounds = array<i64: 256, 4>}, {pipeline_mode = #tpu.pipeline_mode<synchronous>, transform_indices = @transform_1, window_bounds = array<i64: 4, 16>}, {pipeline_mode = #tpu.pipeline_mode<synchronous>, transform_indices = @transform_2, window_bounds = array<i64: 1, 16>}, {transform_indices = @transform_3, window_bounds = array<i64: 256, 16>}]} {
    %c0 = arith.constant 0 : index
    %c0_0 = arith.constant 0 : index
    %0 = vector.load %arg1[%c0, %c0_0] : memref<256x4xf32, #tpu.memory_space<vmem>>, vector<256x4xf32>
    %c0_1 = arith.constant 0 : index
    %c0_2 = arith.constant 0 : index
    %1 = vector.load %arg2[%c0_1, %c0_2] : memref<4x16xf32, #tpu.memory_space<vmem>>, vector<4x16xf32>
    %cst = arith.constant dense<0.000000e+00> : vector<256x16xf32>
    %2 = tpu.matmul %0, %1, %cst {dimension_numbers = #tpu.dot_dimension_numbers<[1], [0], [0], [1], [0, 0, 1, 1], [], []>} : vector<256x4xf32>, vector<4x16xf32>, vector<256x16xf32> -> vector<256x16xf32>
    %c0_3 = arith.constant 0 : index
    %c0_4 = arith.constant 0 : index
    %3 = vector.load %arg3[%c0_3, %c0_4] : memref<1x16xf32, #tpu.memory_space<vmem>>, vector<1x16xf32>
    %4 = vector.broadcast %3 : vector<1x16xf32> to vector<256x16xf32>
    %5 = arith.addf %2, %4 : vector<256x16xf32>
    %cst_5 = arith.constant 0.000000e+00 : f32
    %6 = vector.broadcast %cst_5 : f32 to vector<256x16xf32>
    %7 = arith.maximumf %5, %6 : vector<256x16xf32>
    %c0_6 = arith.constant 0 : index
    %c0_7 = arith.constant 0 : index
    %8 = vector.load %arg4[%c0_6, %c0_7] : memref<256x16xf32, #tpu.memory_space<vmem>>, vector<256x16xf32>
    tpu.vector_store %arg4[%c0_6, %c0_7], %7 {strides = array<i32>} : memref<256x16xf32, #tpu.memory_space<vmem>>, vector<256x16xf32>,
    return
  }
  func.func @transform_0(%arg0: i32) -> (i32, i32) {
    %c0_i32 = arith.constant 0 : i32
    %c0_i32_0 = arith.constant 0 : i32
    return %arg0, %c0_i32 : i32, i32
  }
  func.func @transform_1(%arg0: i32) -> (i32, i32) {
    %c0_i32 = arith.constant 0 : i32
    %c0_i32_0 = arith.constant 0 : i32
    %c0_i32_1 = arith.constant 0 : i32
    return %c0_i32, %c0_i32_0 : i32, i32
  }
  func.func @transform_2(%arg0: i32) -> (i32, i32) {
    %c0_i32 = arith.constant 0 : i32
    %c0_i32_0 = arith.constant 0 : i32
    %c0_i32_1 = arith.constant 0 : i32
    return %c0_i32, %c0_i32_0 : i32, i32
  }
  func.func @transform_3(%arg0: i32) -> (i32, i32) {
    %c0_i32 = arith.constant 0 : i32
    %c0_i32_0 = arith.constant 0 : i32
    return %arg0, %c0_i32 : i32, i32
  }
}

module attributes {stable_mosaic.version = 11 : i64} {
  func.func @_conv3x3_bias_relu_kernel(%arg0: i32, %arg1: i32, %arg2: memref<1x18x18x4xf32, #tpu.memory_space<vmem>>, %arg3: memref<3x12x8xf32, #tpu.memory_space<vmem>>, %arg4: memref<1x8xf32, #tpu.memory_space<vmem>>, %arg5: memref<1x8x16x8xf32, #tpu.memory_space<vmem>>, %arg6: memref<18x16x12xf32, #tpu.memory_space<vmem>>) attributes {dimension_semantics = [#tpu.dimension_semantics<parallel>, #tpu.dimension_semantics<arbitrary>], iteration_bounds = array<i64: 2, 2>, scalar_prefetch = 0 : i64, scratch_operands = 1 : i64, tpu.core_type = #tpu.core_type<tc>, window_params = [{transform_indices = @transform_0, window_bounds = array<i64: 1, 18, 18, 4>}, {pipeline_mode = #tpu.pipeline_mode<synchronous>, transform_indices = @transform_1, window_bounds = array<i64: 3, 12, 8>}, {pipeline_mode = #tpu.pipeline_mode<synchronous>, transform_indices = @transform_2, window_bounds = array<i64: 1, 8>}, {transform_indices = @transform_3, window_bounds = array<i64: 1, 8, 16, 8>}]} {
    %c0_i32 = arith.constant 0 : i32
    %0 = arith.cmpi eq, %arg1, %c0_i32 : i32
    %1 = arith.extui %0 : i1 to i32
    %c0_i32_0 = arith.constant 0 : i32
    %2 = arith.cmpi ne, %1, %c0_i32_0 : i32
    scf.if %2 {
      %c0_24 = arith.constant 0 : index
      %c0_25 = arith.constant 0 : index
      %c0_26 = arith.constant 0 : index
      %c0_27 = arith.constant 0 : index
      %37 = vector.load %arg2[%c0_24, %c0_25, %c0_26, %c0_27] : memref<1x18x18x4xf32, #tpu.memory_space<vmem>>, vector<1x18x16x4xf32>
      %38 = vector.shape_cast %37 : vector<1x18x16x4xf32> to vector<18x16x4xf32>
      %c0_28 = arith.constant 0 : index
      %c0_29 = arith.constant 0 : index
      %c1_30 = arith.constant 1 : index
      %c0_31 = arith.constant 0 : index
      %39 = vector.load %arg2[%c0_28, %c0_29, %c1_30, %c0_31] : memref<1x18x18x4xf32, #tpu.memory_space<vmem>>, vector<1x18x16x4xf32>
      %40 = vector.shape_cast %39 : vector<1x18x16x4xf32> to vector<18x16x4xf32>
      %c0_32 = arith.constant 0 : index
      %c0_33 = arith.constant 0 : index
      %c2_34 = arith.constant 2 : index
      %c0_35 = arith.constant 0 : index
      %41 = vector.load %arg2[%c0_32, %c0_33, %c2_34, %c0_35] : memref<1x18x18x4xf32, #tpu.memory_space<vmem>>, vector<1x18x16x4xf32>
      %42 = vector.shape_cast %41 : vector<1x18x16x4xf32> to vector<18x16x4xf32>
      %43 = tpu.concatenate %38, %40, %42 in 2 : vector<18x16x4xf32>, vector<18x16x4xf32>, vector<18x16x4xf32> -> vector<18x16x12xf32>
      %c0_36 = arith.constant 0 : index
      %c0_37 = arith.constant 0 : index
      %c0_38 = arith.constant 0 : index
      %44 = vector.load %arg6[%c0_36, %c0_37, %c0_38] : memref<18x16x12xf32, #tpu.memory_space<vmem>>, vector<18x16x12xf32>
      tpu.vector_store %arg6[%c0_36, %c0_37, %c0_38], %43 {strides = array<i32>} : memref<18x16x12xf32, #tpu.memory_space<vmem>>, vector<18x16x12xf32>,
    } else {
    }
    %c8_i32 = arith.constant 8 : i32
    %3 = arith.muli %arg1, %c8_i32 : i32
    %4 = tpu.assume_multiple %3, 8 : i32
    %cst = arith.constant 0.000000e+00 : f32
    %5 = vector.broadcast %cst : f32 to vector<128x8xf32>
    %c0_i32_1 = arith.constant 0 : i32
    %6 = arith.addi %4, %c0_i32_1 : i32
    %7 = arith.index_cast %6 : i32 to index
    %c0 = arith.constant 0 : index
    %c0_2 = arith.constant 0 : index
    %8 = vector.load %arg6[%7, %c0, %c0_2] : memref<18x16x12xf32, #tpu.memory_space<vmem>>, vector<8x16x12xf32>
    %9 = vector.shape_cast %8 : vector<8x16x12xf32> to vector<128x12xf32>
    %c0_3 = arith.constant 0 : index
    %c0_4 = arith.constant 0 : index
    %c0_5 = arith.constant 0 : index
    %10 = vector.load %arg3[%c0_3, %c0_4, %c0_5] : memref<3x12x8xf32, #tpu.memory_space<vmem>>, vector<1x12x8xf32>
    %11 = vector.shape_cast %10 : vector<1x12x8xf32> to vector<12x8xf32>
    %cst_6 = arith.constant dense<0.000000e+00> : vector<128x8xf32>
    %12 = tpu.matmul %9, %11, %cst_6 {dimension_numbers = #tpu.dot_dimension_numbers<[1], [0], [0], [1], [0, 0, 1, 1], [], []>} : vector<128x12xf32>, vector<12x8xf32>, vector<128x8xf32> -> vector<128x8xf32>
    %13 = arith.addf %5, %12 : vector<128x8xf32>
    %c1_i32 = arith.constant 1 : i32
    %14 = arith.addi %4, %c1_i32 : i32
    %15 = arith.index_cast %14 : i32 to index
    %c0_7 = arith.constant 0 : index
    %c0_8 = arith.constant 0 : index
    %16 = vector.load %arg6[%15, %c0_7, %c0_8] : memref<18x16x12xf32, #tpu.memory_space<vmem>>, vector<8x16x12xf32>
    %17 = vector.shape_cast %16 : vector<8x16x12xf32> to vector<128x12xf32>
    %c1 = arith.constant 1 : index
    %c0_9 = arith.constant 0 : index
    %c0_10 = arith.constant 0 : index
    %18 = vector.load %arg3[%c1, %c0_9, %c0_10] : memref<3x12x8xf32, #tpu.memory_space<vmem>>, vector<1x12x8xf32>
    %19 = vector.shape_cast %18 : vector<1x12x8xf32> to vector<12x8xf32>
    %cst_11 = arith.constant dense<0.000000e+00> : vector<128x8xf32>
    %20 = tpu.matmul %17, %19, %cst_11 {dimension_numbers = #tpu.dot_dimension_numbers<[1], [0], [0], [1], [0, 0, 1, 1], [], []>} : vector<128x12xf32>, vector<12x8xf32>, vector<128x8xf32> -> vector<128x8xf32>
    %21 = arith.addf %13, %20 : vector<128x8xf32>
    %c2_i32 = arith.constant 2 : i32
    %22 = arith.addi %4, %c2_i32 : i32
    %23 = arith.index_cast %22 : i32 to index
    %c0_12 = arith.constant 0 : index
    %c0_13 = arith.constant 0 : index
    %24 = vector.load %arg6[%23, %c0_12, %c0_13] : memref<18x16x12xf32, #tpu.memory_space<vmem>>, vector<8x16x12xf32>
    %25 = vector.shape_cast %24 : vector<8x16x12xf32> to vector<128x12xf32>
    %c2 = arith.constant 2 : index
    %c0_14 = arith.constant 0 : index
    %c0_15 = arith.constant 0 : index
    %26 = vector.load %arg3[%c2, %c0_14, %c0_15] : memref<3x12x8xf32, #tpu.memory_space<vmem>>, vector<1x12x8xf32>
    %27 = vector.shape_cast %26 : vector<1x12x8xf32> to vector<12x8xf32>
    %cst_16 = arith.constant dense<0.000000e+00> : vector<128x8xf32>
    %28 = tpu.matmul %25, %27, %cst_16 {dimension_numbers = #tpu.dot_dimension_numbers<[1], [0], [0], [1], [0, 0, 1, 1], [], []>} : vector<128x12xf32>, vector<12x8xf32>, vector<128x8xf32> -> vector<128x8xf32>
    %29 = arith.addf %21, %28 : vector<128x8xf32>
    %c0_17 = arith.constant 0 : index
    %c0_18 = arith.constant 0 : index
    %30 = vector.load %arg4[%c0_17, %c0_18] : memref<1x8xf32, #tpu.memory_space<vmem>>, vector<1x8xf32>
    %31 = vector.broadcast %30 : vector<1x8xf32> to vector<128x8xf32>
    %32 = arith.addf %29, %31 : vector<128x8xf32>
    %cst_19 = arith.constant 0.000000e+00 : f32
    %33 = vector.broadcast %cst_19 : f32 to vector<128x8xf32>
    %34 = arith.maximumf %32, %33 : vector<128x8xf32>
    %35 = vector.shape_cast %34 : vector<128x8xf32> to vector<1x8x16x8xf32>
    %c0_20 = arith.constant 0 : index
    %c0_21 = arith.constant 0 : index
    %c0_22 = arith.constant 0 : index
    %c0_23 = arith.constant 0 : index
    %36 = vector.load %arg5[%c0_20, %c0_21, %c0_22, %c0_23] : memref<1x8x16x8xf32, #tpu.memory_space<vmem>>, vector<1x8x16x8xf32>
    tpu.vector_store %arg5[%c0_20, %c0_21, %c0_22, %c0_23], %35 {strides = array<i32>} : memref<1x8x16x8xf32, #tpu.memory_space<vmem>>, vector<1x8x16x8xf32>,
    return
  }
  func.func @transform_0(%arg0: i32, %arg1: i32) -> (i32, i32, i32, i32) {
    %c0_i32 = arith.constant 0 : i32
    %c0_i32_0 = arith.constant 0 : i32
    %c0_i32_1 = arith.constant 0 : i32
    %c0_i32_2 = arith.constant 0 : i32
    return %arg0, %c0_i32, %c0_i32_0, %c0_i32_1 : i32, i32, i32, i32
  }
  func.func @transform_1(%arg0: i32, %arg1: i32) -> (i32, i32, i32) {
    %c0_i32 = arith.constant 0 : i32
    %c0_i32_0 = arith.constant 0 : i32
    %c0_i32_1 = arith.constant 0 : i32
    %c0_i32_2 = arith.constant 0 : i32
    return %c0_i32, %c0_i32_0, %c0_i32_1 : i32, i32, i32
  }
  func.func @transform_2(%arg0: i32, %arg1: i32) -> (i32, i32) {
    %c0_i32 = arith.constant 0 : i32
    %c0_i32_0 = arith.constant 0 : i32
    %c0_i32_1 = arith.constant 0 : i32
    return %c0_i32, %c0_i32_0 : i32, i32
  }
  func.func @transform_3(%arg0: i32, %arg1: i32) -> (i32, i32, i32, i32) {
    %c0_i32 = arith.constant 0 : i32
    %c0_i32_0 = arith.constant 0 : i32
    %c0_i32_1 = arith.constant 0 : i32
    return %arg0, %arg1, %c0_i32, %c0_i32_0 : i32, i32, i32, i32
  }
}

module attributes {stable_mosaic.version = 11 : i64} {
  func.func @_maxpool_proj_kernel(%arg0: i32, %arg1: i32, %arg2: memref<1x18x18x4xf32, #tpu.memory_space<vmem>>, %arg3: memref<4x8xf32, #tpu.memory_space<vmem>>, %arg4: memref<1x8xf32, #tpu.memory_space<vmem>>, %arg5: memref<1x8x16x8xf32, #tpu.memory_space<vmem>>, %arg6: memref<18x16x4xf32, #tpu.memory_space<vmem>>) attributes {dimension_semantics = [#tpu.dimension_semantics<parallel>, #tpu.dimension_semantics<arbitrary>], iteration_bounds = array<i64: 2, 2>, scalar_prefetch = 0 : i64, scratch_operands = 1 : i64, tpu.core_type = #tpu.core_type<tc>, window_params = [{transform_indices = @transform_0, window_bounds = array<i64: 1, 18, 18, 4>}, {pipeline_mode = #tpu.pipeline_mode<synchronous>, transform_indices = @transform_1, window_bounds = array<i64: 4, 8>}, {pipeline_mode = #tpu.pipeline_mode<synchronous>, transform_indices = @transform_2, window_bounds = array<i64: 1, 8>}, {transform_indices = @transform_3, window_bounds = array<i64: 1, 8, 16, 8>}]} {
    %c0_i32 = arith.constant 0 : i32
    %0 = arith.cmpi eq, %arg1, %c0_i32 : i32
    %1 = arith.extui %0 : i1 to i32
    %c0_i32_0 = arith.constant 0 : i32
    %2 = arith.cmpi ne, %1, %c0_i32_0 : i32
    scf.if %2 {
      %c0_15 = arith.constant 0 : index
      %c0_16 = arith.constant 0 : index
      %c0_17 = arith.constant 0 : index
      %c0_18 = arith.constant 0 : index
      %25 = vector.load %arg2[%c0_15, %c0_16, %c0_17, %c0_18] : memref<1x18x18x4xf32, #tpu.memory_space<vmem>>, vector<1x18x16x4xf32>
      %26 = vector.shape_cast %25 : vector<1x18x16x4xf32> to vector<18x16x4xf32>
      %c0_19 = arith.constant 0 : index
      %c0_20 = arith.constant 0 : index
      %c1 = arith.constant 1 : index
      %c0_21 = arith.constant 0 : index
      %27 = vector.load %arg2[%c0_19, %c0_20, %c1, %c0_21] : memref<1x18x18x4xf32, #tpu.memory_space<vmem>>, vector<1x18x16x4xf32>
      %28 = vector.shape_cast %27 : vector<1x18x16x4xf32> to vector<18x16x4xf32>
      %29 = arith.maximumf %26, %28 : vector<18x16x4xf32>
      %c0_22 = arith.constant 0 : index
      %c0_23 = arith.constant 0 : index
      %c2 = arith.constant 2 : index
      %c0_24 = arith.constant 0 : index
      %30 = vector.load %arg2[%c0_22, %c0_23, %c2, %c0_24] : memref<1x18x18x4xf32, #tpu.memory_space<vmem>>, vector<1x18x16x4xf32>
      %31 = vector.shape_cast %30 : vector<1x18x16x4xf32> to vector<18x16x4xf32>
      %32 = arith.maximumf %29, %31 : vector<18x16x4xf32>
      %c0_25 = arith.constant 0 : index
      %c0_26 = arith.constant 0 : index
      %c0_27 = arith.constant 0 : index
      %33 = vector.load %arg6[%c0_25, %c0_26, %c0_27] : memref<18x16x4xf32, #tpu.memory_space<vmem>>, vector<18x16x4xf32>
      tpu.vector_store %arg6[%c0_25, %c0_26, %c0_27], %32 {strides = array<i32>} : memref<18x16x4xf32, #tpu.memory_space<vmem>>, vector<18x16x4xf32>,
    } else {
    }
    %c8_i32 = arith.constant 8 : i32
    %3 = arith.muli %arg1, %c8_i32 : i32
    %4 = tpu.assume_multiple %3, 8 : i32
    %5 = arith.index_cast %4 : i32 to index
    %c0 = arith.constant 0 : index
    %c0_1 = arith.constant 0 : index
    %6 = vector.load %arg6[%5, %c0, %c0_1] : memref<18x16x4xf32, #tpu.memory_space<vmem>>, vector<8x16x4xf32>
    %c1_i32 = arith.constant 1 : i32
    %7 = arith.addi %4, %c1_i32 : i32
    %8 = arith.index_cast %7 : i32 to index
    %c0_2 = arith.constant 0 : index
    %c0_3 = arith.constant 0 : index
    %9 = vector.load %arg6[%8, %c0_2, %c0_3] : memref<18x16x4xf32, #tpu.memory_space<vmem>>, vector<8x16x4xf32>
    %10 = arith.maximumf %6, %9 : vector<8x16x4xf32>
    %c2_i32 = arith.constant 2 : i32
    %11 = arith.addi %4, %c2_i32 : i32
    %12 = arith.index_cast %11 : i32 to index
    %c0_4 = arith.constant 0 : index
    %c0_5 = arith.constant 0 : index
    %13 = vector.load %arg6[%12, %c0_4, %c0_5] : memref<18x16x4xf32, #tpu.memory_space<vmem>>, vector<8x16x4xf32>
    %14 = arith.maximumf %10, %13 : vector<8x16x4xf32>
    %15 = vector.shape_cast %14 : vector<8x16x4xf32> to vector<128x4xf32>
    %c0_6 = arith.constant 0 : index
    %c0_7 = arith.constant 0 : index
    %16 = vector.load %arg3[%c0_6, %c0_7] : memref<4x8xf32, #tpu.memory_space<vmem>>, vector<4x8xf32>
    %cst = arith.constant dense<0.000000e+00> : vector<128x8xf32>
    %17 = tpu.matmul %15, %16, %cst {dimension_numbers = #tpu.dot_dimension_numbers<[1], [0], [0], [1], [0, 0, 1, 1], [], []>} : vector<128x4xf32>, vector<4x8xf32>, vector<128x8xf32> -> vector<128x8xf32>
    %c0_8 = arith.constant 0 : index
    %c0_9 = arith.constant 0 : index
    %18 = vector.load %arg4[%c0_8, %c0_9] : memref<1x8xf32, #tpu.memory_space<vmem>>, vector<1x8xf32>
    %19 = vector.broadcast %18 : vector<1x8xf32> to vector<128x8xf32>
    %20 = arith.addf %17, %19 : vector<128x8xf32>
    %cst_10 = arith.constant 0.000000e+00 : f32
    %21 = vector.broadcast %cst_10 : f32 to vector<128x8xf32>
    %22 = arith.maximumf %20, %21 : vector<128x8xf32>
    %23 = vector.shape_cast %22 : vector<128x8xf32> to vector<1x8x16x8xf32>
    %c0_11 = arith.constant 0 : index
    %c0_12 = arith.constant 0 : index
    %c0_13 = arith.constant 0 : index
    %c0_14 = arith.constant 0 : index
    %24 = vector.load %arg5[%c0_11, %c0_12, %c0_13, %c0_14] : memref<1x8x16x8xf32, #tpu.memory_space<vmem>>, vector<1x8x16x8xf32>
    tpu.vector_store %arg5[%c0_11, %c0_12, %c0_13, %c0_14], %23 {strides = array<i32>} : memref<1x8x16x8xf32, #tpu.memory_space<vmem>>, vector<1x8x16x8xf32>,
    return
  }
  func.func @transform_0(%arg0: i32, %arg1: i32) -> (i32, i32, i32, i32) {
    %c0_i32 = arith.constant 0 : i32
    %c0_i32_0 = arith.constant 0 : i32
    %c0_i32_1 = arith.constant 0 : i32
    %c0_i32_2 = arith.constant 0 : i32
    return %arg0, %c0_i32, %c0_i32_0, %c0_i32_1 : i32, i32, i32, i32
  }
  func.func @transform_1(%arg0: i32, %arg1: i32) -> (i32, i32) {
    %c0_i32 = arith.constant 0 : i32
    %c0_i32_0 = arith.constant 0 : i32
    %c0_i32_1 = arith.constant 0 : i32
    return %c0_i32, %c0_i32_0 : i32, i32
  }
  func.func @transform_2(%arg0: i32, %arg1: i32) -> (i32, i32) {
    %c0_i32 = arith.constant 0 : i32
    %c0_i32_0 = arith.constant 0 : i32
    %c0_i32_1 = arith.constant 0 : i32
    return %c0_i32, %c0_i32_0 : i32, i32
  }
  func.func @transform_3(%arg0: i32, %arg1: i32) -> (i32, i32, i32, i32) {
    %c0_i32 = arith.constant 0 : i32
    %c0_i32_0 = arith.constant 0 : i32
    %c0_i32_1 = arith.constant 0 : i32
    return %arg0, %arg1, %c0_i32, %c0_i32_0 : i32, i32, i32, i32
  }
}

</mosaic_0001>

<llo_original>
// kernel: inception_forward.4
$region0: #{inception_forward.4}
  #allocation0 [shape = 'u32[]', space=smem, size = 0x4, offset = 0x4, fixed_abs, tag = 'smem constant byte address 0x4 - core index']
  #allocation1 [shape = 'u32[72,128]{1,0:T(1,128)}', space=vmem, size = 0x9000, scoped, tag = 'internal scratch']
  %s0 = inlined_call_operand.vmem [shape: f32[512,4], index: 0, kind: input, shape index: {}]
  %s1 = inlined_call_operand.vmem [shape: f32[4,16], index: 1, kind: input, shape index: {}]
  %s2 = inlined_call_operand.vmem [shape: f32[1,16], index: 2, kind: input, shape index: {}]
  %s3 = inlined_call_operand.vmem [shape: f32[512,16], index: 3, kind: output, shape index: {}]
  %s4 = sld [smem:[#allocation0]]
  $region45: #{inception_forward.4} parent=0
    _
  %s6 = ssub.s32 1, %s4
  %s7 = scalar_select 0, %s6, %s4
  loop: start=0, step=1, limit=4
  $region2: #{inception_forward.4} parent=0 // loop_pre_header
    _
  $region3: #{inception_forward.4} parent=0 // loop_header
    %s9 = sphi 0, %s13
    %p10 = scmp.ge.s32.totalorder %s9, 4
    %s19 = sphi 0, %s21
    %s22 = sphi 0, %s19
    %s23 = sphi 0, %s22
    %s39 = sphi 0, %s23
    %s43 = sphi 0, %s43
    %s45 = sphi 0, %s43
    %s46 = sphi 0, %s45
    %s60 = sphi 0, %s46
    %s64 = sphi 0, %s64
    %s66 = sphi 0, %s64
    %s67 = sphi 0, %s66
    %s81 = sphi 0, %s67
    %s87 = sphi 0, %s89
    %s90 = sphi 0, %s87
    %s91 = sphi 0, %s90
    %s107 = sphi 0, %s91
  $region4: #{inception_forward.4} parent=0 // loop_header_branch
    %12 = sbr.rel (%p10) target = $region8
  $region5: #{inception_forward.4} parent=0 // loop_body
    %s14 = ssub.s32 %s9, 1
    %s15 = ssub.s32 %s9, 2
    %s16 = sadd.s32 %s9, 1
    %s17 = ssub.s32 %s9, %s16
    %p18 = scmp.eq.s32.totalorder %s17, 0
    %s20 = sadd.s32 %s19, 1
    %s21 = scalar_select %p18, %s19, %s20
    %p24 = pneg %p18
    %p25 = scmp.eq.s32.totalorder %s9, 1
    %p26 = por %p24, %p25
    %p27 = scmp.ne.s32.totalorder %s19, %s22
    %p28 = scmp.eq.s32.totalorder %s9, 0
    %p29 = por %p27, %p28
    %p30 = scmp.ne.s32.totalorder %s19, %s22
    %p31 = scmp.eq.s32.totalorder %s14, 1
    %p32 = por %p30, %p31
    %p33 = scmp.ne.s32.totalorder %s22, %s23
    %p34 = scmp.eq.s32.totalorder %s14, 0
    %p35 = por %p33, %p34
    %p36 = scmp.ne.s32.totalorder %s22, %s23
    %p37 = scmp.eq.s32.totalorder %s15, 1
    %p38 = por %p36, %p37
    %p40 = scmp.ne.s32.totalorder %s23, %s39
    %p41 = scmp.eq.s32.totalorder %s15, 0
    %p42 = por %p40, %p41
    %s44 = sadd.s32 %s43, 1
    %p47 = scmp.eq.s32.totalorder %s9, 1
    %p48 = scmp.ne.s32.totalorder %s43, %s45
    %p49 = scmp.eq.s32.totalorder %s9, 0
    %p50 = por %p48, %p49
    %p51 = scmp.ne.s32.totalorder %s43, %s45
    %p52 = scmp.eq.s32.totalorder %s14, 1
    %p53 = por %p51, %p52
    %p54 = scmp.ne.s32.totalorder %s45, %s46
    %p55 = scmp.eq.s32.totalorder %s14, 0
    %p56 = por %p54, %p55
    %p57 = scmp.ne.s32.totalorder %s45, %s46
    %p58 = scmp.eq.s32.totalorder %s15, 1
    %p59 = por %p57, %p58
    %p61 = scmp.ne.s32.totalorder %s46, %s60
    %p62 = scmp.eq.s32.totalorder %s15, 0
    %p63 = por %p61, %p62
    %s65 = sadd.s32 %s64, 1
    %p68 = scmp.eq.s32.totalorder %s9, 1
    %p69 = scmp.ne.s32.totalorder %s64, %s66
    %p70 = scmp.eq.s32.totalorder %s9, 0
    %p71 = por %p69, %p70
    %p72 = scmp.ne.s32.totalorder %s64, %s66
    %p73 = scmp.eq.s32.totalorder %s14, 1
    %p74 = por %p72, %p73
    %p75 = scmp.ne.s32.totalorder %s66, %s67
    %p76 = scmp.eq.s32.totalorder %s14, 0
    %p77 = por %p75, %p76
    %p78 = scmp.ne.s32.totalorder %s66, %s67
    %p79 = scmp.eq.s32.totalorder %s15, 1
    %p80 = por %p78, %p79
    %p82 = scmp.ne.s32.totalorder %s67, %s81
    %p83 = scmp.eq.s32.totalorder %s15, 0
    %p84 = por %p82, %p83
    %s85 = ssub.s32 %s9, %s16
    %p86 = scmp.eq.s32.totalorder %s85, 0
    %s88 = sadd.s32 %s87, 1
    %s89 = scalar_select %p86, %s87, %s88
    %p92 = pneg %p86
    %p93 = scmp.eq.s32.totalorder %s9, 1
    %p94 = por %p92, %p93
    %p95 = scmp.ne.s32.totalorder %s87, %s90
    %p96 = scmp.eq.s32.totalorder %s9, 0
    %p97 = por %p95, %p96
    %p98 = scmp.ne.s32.totalorder %s87, %s90
    %p99 = scmp.eq.s32.totalorder %s14, 1
    %p100 = por %p98, %p99
    %p101 = scmp.ne.s32.totalorder %s90, %s91
    %p102 = scmp.eq.s32.totalorder %s14, 0
    %p103 = por %p101, %p102
    %p104 = scmp.ne.s32.totalorder %s90, %s91
    %p105 = scmp.eq.s32.totalorder %s15, 1
    %p106 = por %p104, %p105
    %p108 = scmp.ne.s32.totalorder %s91, %s107
    %p109 = scmp.eq.s32.totalorder %s15, 0
    %p110 = por %p108, %p109
    %p111 = scmp.le.s32.totalorder 1, %s9
    %p112 = scmp.lt.s32.totalorder %s9, 3
    %p113 = pnand %p111, %p112
    %p114 = pneg %p113
    // Predicated region
    $region9: #{inception_forward.4} parent=5 // pred_check
      _
    $region10: #{inception_forward.4} parent=5 // pred_check_branch
      %116 = sbr.rel (%p113) target = $region12
    $region11: #{inception_forward.4} parent=5 // pred_region
      %s117 = ssub.s32 %s9, 1
      // Predicated region
      $region13: #{inception_forward.4} parent=11 // pred_check
        %p118 = pneg %p56
      $region14: #{inception_forward.4} parent=11 // pred_check_branch
        %120 = sbr.rel (%p118) target = $region16
      $region15: #{inception_forward.4} parent=11 // pred_region
        _
      $region16: #{inception_forward.4} parent=11 // pred_fallthru
        _
      // Predicated region
      $region17: #{inception_forward.4} parent=11 // pred_check
        %p121 = pneg %p77
      $region18: #{inception_forward.4} parent=11 // pred_check_branch
        %123 = sbr.rel (%p121) target = $region20
      $region19: #{inception_forward.4} parent=11 // pred_region
        _
      $region20: #{inception_forward.4} parent=11 // pred_fallthru
        _
    $region12: #{inception_forward.4} parent=5 // pred_fallthru
      _
    %p124 = scmp.lt.s32.totalorder %s9, 2
    // Predicated region
    $region21: #{inception_forward.4} parent=5 // pred_check
      %p125 = pneg %p124
    $region22: #{inception_forward.4} parent=5 // pred_check_branch
      %127 = sbr.rel (%p125) target = $region24
    $region23: #{inception_forward.4} parent=5 // pred_region
      // Predicated region
      $region25: #{inception_forward.4} parent=23 // pred_check
        %p128 = pneg %p29
      $region26: #{inception_forward.4} parent=23 // pred_check_branch
        %130 = sbr.rel (%p128) target = $region28
      $region27: #{inception_forward.4} parent=23 // pred_region
        %s131 = smul.u32 32, %s9
        %p132 = scmp.lt.s32.totalorder %s131, 63
        %s133 = scalar_select %p132, %s131, 63
        %s134 = smul.addr %s133, 8
        %s135 = scalar_lea.vmem %s0, %s134
        %s136 = smul.u32 32, %s9
      $region28: #{inception_forward.4} parent=23 // pred_fallthru
        _
    $region24: #{inception_forward.4} parent=5 // pred_fallthru
      _
    %p137 = scmp.le.s32.totalorder 1, %s9
    %p138 = scmp.lt.s32.totalorder %s9, 3
    %p139 = pnand %p137, %p138
    %p140 = pneg %p139
    // Predicated region
    $region29: #{inception_forward.4} parent=5 // pred_check
      _
    $region30: #{inception_forward.4} parent=5 // pred_check_branch
      %142 = sbr.rel (%p139) target = $region32
    $region31: #{inception_forward.4} parent=5 // pred_region
      %s143 = ssub.s32 %s9, 1
      %s144 = smul.u32 32, %s14
      %p145 = scmp.lt.s32.totalorder %s144, 63
      %s146 = scalar_select %p145, %s144, 63
      %s147 = smul.addr %s146, 8
      %s148 = scalar_lea.vmem %s0, %s147
      %p149 = pneg %p35
      %p150 = pneg %p32
      %p151 = pneg %p56
      %p152 = pneg %p53
      %p153 = pneg %p77
      %p154 = pneg %p74
      %p155 = pneg %p103
      %p156 = pneg %p100
      %s157 = smul.u32 32, %s14
      %p158 = scmp.lt.s32.totalorder %s157, 63
      %s159 = scalar_select %p158, %s157, 63
      %s160 = smul.addr %s159, 8
      %s161 = scalar_lea.vmem %s3, %s160
      %s162 = smul.u32 32, %s14
      %p163 = scmp.lt.s32.totalorder %s162, 63
      %s164 = scalar_select %p163, %s162, 63
      %s165 = smul.addr %s164, 8
      %s166 = scalar_lea.vmem %s0, %s165
      %s167 = smul.u32 32, %s14
      %s168 = smul.u32 32, %s14
      %p169 = scmp.lt.s32.totalorder %s168, 63
      %s170 = scalar_select %p169, %s168, 63
      %s171 = smul.addr %s170, 8
      %s172 = scalar_lea.vmem %s3, %s171
      %s173 = smul.u32 32, %s14
      %v174 = vld [vmem:[%s166] sm:$0xff]
      %v175 = vld [vmem:[%s166 + $0x8] sm:$0xff]
      %v176 = vld [vmem:[%s166 + $0x10] sm:$0xff]
      %v177 = vld [vmem:[%s166 + $0x18] sm:$0xff]
      %v178 = vld [vmem:[%s166 + $0x20] sm:$0xff]
      %v179 = vld [vmem:[%s166 + $0x28] sm:$0xff]
      %v180 = vld [vmem:[%s166 + $0x30] sm:$0xff]
      %v181 = vld [vmem:[%s166 + $0x38] sm:$0xff]
      %v182 = vld [vmem:[%s166 + $0x40] sm:$0xff]
      %v183 = vld [vmem:[%s166 + $0x48] sm:$0xff]
      %v184 = vld [vmem:[%s166 + $0x50] sm:$0xff]
      %v185 = vld [vmem:[%s166 + $0x58] sm:$0xff]
      %v186 = vld [vmem:[%s166 + $0x60] sm:$0xff]
      %v187 = vld [vmem:[%s166 + $0x68] sm:$0xff]
      %v188 = vld [vmem:[%s166 + $0x70] sm:$0xff]
      %v189 = vld [vmem:[%s166 + $0x78] sm:$0xff]
      %v190 = vld [vmem:[%s166 + $0x80] sm:$0xff]
      %v191 = vld [vmem:[%s166 + $0x88] sm:$0xff]
      %v192 = vld [vmem:[%s166 + $0x90] sm:$0xff]
      %v193 = vld [vmem:[%s166 + $0x98] sm:$0xff]
      %v194 = vld [vmem:[%s166 + $0xa0] sm:$0xff]
      %v195 = vld [vmem:[%s166 + $0xa8] sm:$0xff]
      %v196 = vld [vmem:[%s166 + $0xb0] sm:$0xff]
      %v197 = vld [vmem:[%s166 + $0xb8] sm:$0xff]
      %v198 = vld [vmem:[%s166 + $0xc0] sm:$0xff]
      %v199 = vld [vmem:[%s166 + $0xc8] sm:$0xff]
      %v200 = vld [vmem:[%s166 + $0xd0] sm:$0xff]
      %v201 = vld [vmem:[%s166 + $0xd8] sm:$0xff]
      %v202 = vld [vmem:[%s166 + $0xe0] sm:$0xff]
      %v203 = vld [vmem:[%s166 + $0xe8] sm:$0xff]
      %v204 = vld [vmem:[%s166 + $0xf0] sm:$0xff]
      %v205 = vld [vmem:[%s166 + $0xf8] sm:$0xff]
      %v206 = vld [vmem:[%s1] sm:$0xf]
      %v207 = vld [vmem:[%s2] sm:$0x1]
      %v209 = vperm.slane %v207, 0
      %vm211 = vcmask 31744
      %v213 = vsel %vm211, %v174, 0
      %v216 = vsel %vm211, %v175, 0
      %v219 = vsel %vm211, %v176, 0
      %v222 = vsel %vm211, %v177, 0
      %v225 = vsel %vm211, %v178, 0
      %v228 = vsel %vm211, %v179, 0
      %v231 = vsel %vm211, %v180, 0
      %v234 = vsel %vm211, %v181, 0
      %v237 = vsel %vm211, %v182, 0
      %v240 = vsel %vm211, %v183, 0
      %v243 = vsel %vm211, %v184, 0
      %v246 = vsel %vm211, %v185, 0
      %v249 = vsel %vm211, %v186, 0
      %v252 = vsel %vm211, %v187, 0
      %v255 = vsel %vm211, %v188, 0
      %v258 = vsel %vm211, %v189, 0
      %v261 = vsel %vm211, %v190, 0
      %v264 = vsel %vm211, %v191, 0
      %v267 = vsel %vm211, %v192, 0
      %v270 = vsel %vm211, %v193, 0
      %v273 = vsel %vm211, %v194, 0
      %v276 = vsel %vm211, %v195, 0
      %v279 = vsel %vm211, %v196, 0
      %v282 = vsel %vm211, %v197, 0
      %v285 = vsel %vm211, %v198, 0
      %v288 = vsel %vm211, %v199, 0
      %v291 = vsel %vm211, %v200, 0
      %v294 = vsel %vm211, %v201, 0
      %v297 = vsel %vm211, %v202, 0
      %v300 = vsel %vm211, %v203, 0
      %v303 = vsel %vm211, %v204, 0
      %v306 = vsel %vm211, %v205, 0
      %vm308 = vcmask 1043456
      %v310 = vsel %vm308, %v206, 0
      %312 = vmatpush.msra.mxu0 0.0
      %313 = vmatpush.msra.mxu0 0.0
      %314 = vmatpush.msra.mxu0 0.0
      %315 = vmatpush.msra.mxu0 0.0
      %316 = vmatpush.msra.mxu0 0.0
      %317 = vmatpush.msra.mxu0 0.0
      %318 = vmatpush.msra.mxu0 0.0
      %319 = vmatpush.msra.mxu0 0.0
      %320 = vmatpush.msra.mxu0 0.0
      %321 = vmatpush.msra.mxu0 0.0
      %322 = vmatpush.msra.mxu0 0.0
      %323 = vmatpush.msra.mxu0 0.0
      %324 = vmatpush.msra.mxu0 0.0
      %325 = vmatpush.msra.mxu0 0.0
      %326 = vmatpush.msra.mxu0 0.0
      %327 = vmatpush.msra.mxu0 %v310
      %328 = vmatmul.f32.gmra.mxu0 %v213
      %v329 = vpop.f32.mrf.mxu0
      %v330 = vadd.f32 %v209, %v329
      %331 = vmatmul.f32.gmra.mxu0 %v216
      %v332 = vpop.f32.mrf.mxu0
      %v333 = vadd.f32 %v209, %v332
      %334 = vmatmul.f32.gmra.mxu0 %v219
      %v335 = vpop.f32.mrf.mxu0
      %v336 = vadd.f32 %v209, %v335
      %337 = vmatmul.f32.gmra.mxu0 %v222
      %v338 = vpop.f32.mrf.mxu0
      %v339 = vadd.f32 %v209, %v338
      %340 = vmatmul.f32.gmra.mxu0 %v225
      %v341 = vpop.f32.mrf.mxu0
      %v342 = vadd.f32 %v209, %v341
      %343 = vmatmul.f32.gmra.mxu0 %v228
      %v344 = vpop.f32.mrf.mxu0
      %v345 = vadd.f32 %v209, %v344
      %346 = vmatmul.f32.gmra.mxu0 %v231
      %v347 = vpop.f32.mrf.mxu0
      %v348 = vadd.f32 %v209, %v347
      %349 = vmatmul.f32.gmra.mxu0 %v234
      %v350 = vpop.f32.mrf.mxu0
      %v351 = vadd.f32 %v209, %v350
      %352 = vmatmul.f32.gmra.mxu0 %v237
      %v353 = vpop.f32.mrf.mxu0
      %v354 = vadd.f32 %v209, %v353
      %355 = vmatmul.f32.gmra.mxu0 %v240
      %v356 = vpop.f32.mrf.mxu0
      %v357 = vadd.f32 %v209, %v356
      %358 = vmatmul.f32.gmra.mxu0 %v243
      %v359 = vpop.f32.mrf.mxu0
      %v360 = vadd.f32 %v209, %v359
      %361 = vmatmul.f32.gmra.mxu0 %v246
      %v362 = vpop.f32.mrf.mxu0
      %v363 = vadd.f32 %v209, %v362
      %364 = vmatmul.f32.gmra.mxu0 %v249
      %v365 = vpop.f32.mrf.mxu0
      %v366 = vadd.f32 %v209, %v365
      %367 = vmatmul.f32.gmra.mxu0 %v252
      %v368 = vpop.f32.mrf.mxu0
      %v369 = vadd.f32 %v209, %v368
      %370 = vmatmul.f32.gmra.mxu0 %v255
      %v371 = vpop.f32.mrf.mxu0
      %v372 = vadd.f32 %v209, %v371
      %373 = vmatmul.f32.gmra.mxu0 %v258
      %v374 = vpop.f32.mrf.mxu0
      %v375 = vadd.f32 %v209, %v374
      %376 = vmatmul.f32.gmra.mxu0 %v261
      %v377 = vpop.f32.mrf.mxu0
      %v378 = vadd.f32 %v209, %v377
      %379 = vmatmul.f32.gmra.mxu0 %v264
      %v380 = vpop.f32.mrf.mxu0
      %v381 = vadd.f32 %v209, %v380
      %382 = vmatmul.f32.gmra.mxu0 %v267
      %v383 = vpop.f32.mrf.mxu0
      %v384 = vadd.f32 %v209, %v383
      %385 = vmatmul.f32.gmra.mxu0 %v270
      %v386 = vpop.f32.mrf.mxu0
      %v387 = vadd.f32 %v209, %v386
      %388 = vmatmul.f32.gmra.mxu0 %v273
      %v389 = vpop.f32.mrf.mxu0
      %v390 = vadd.f32 %v209, %v389
      %391 = vmatmul.f32.gmra.mxu0 %v276
      %v392 = vpop.f32.mrf.mxu0
      %v393 = vadd.f32 %v209, %v392
      %394 = vmatmul.f32.gmra.mxu0 %v279
      %v395 = vpop.f32.mrf.mxu0
      %v396 = vadd.f32 %v209, %v395
      %397 = vmatmul.f32.gmra.mxu0 %v282
      %v398 = vpop.f32.mrf.mxu0
      %v399 = vadd.f32 %v209, %v398
      %400 = vmatmul.f32.gmra.mxu0 %v285
      %v401 = vpop.f32.mrf.mxu0
      %v402 = vadd.f32 %v209, %v401
      %403 = vmatmul.f32.gmra.mxu0 %v288
      %v404 = vpop.f32.mrf.mxu0
      %v405 = vadd.f32 %v209, %v404
      %406 = vmatmul.f32.gmra.mxu0 %v291
      %v407 = vpop.f32.mrf.mxu0
      %v408 = vadd.f32 %v209, %v407
      %409 = vmatmul.f32.gmra.mxu0 %v294
      %v410 = vpop.f32.mrf.mxu0
      %v411 = vadd.f32 %v209, %v410
      %412 = vmatmul.f32.gmra.mxu0 %v297
      %v413 = vpop.f32.mrf.mxu0
      %v414 = vadd.f32 %v209, %v413
      %415 = vmatmul.f32.gmra.mxu0 %v300
      %v416 = vpop.f32.mrf.mxu0
      %v417 = vadd.f32 %v209, %v416
      %418 = vmatmul.f32.gmra.mxu0 %v303
      %v419 = vpop.f32.mrf.mxu0
      %v420 = vadd.f32 %v209, %v419
      %421 = vmatmul.f32.gmra.mxu0 %v306
      %v422 = vpop.f32.mrf.mxu0
      %v423 = vadd.f32 %v209, %v422
      %424 = vdwg.mxu0
      %v425 = vmax.f32 %v330, 0.0
      %v426 = vmax.f32 %v333, 0.0
      %v427 = vmax.f32 %v336, 0.0
      %v428 = vmax.f32 %v339, 0.0
      %v429 = vmax.f32 %v342, 0.0
      %v430 = vmax.f32 %v345, 0.0
      %v431 = vmax.f32 %v348, 0.0
      %v432 = vmax.f32 %v351, 0.0
      %v433 = vmax.f32 %v354, 0.0
      %v434 = vmax.f32 %v357, 0.0
      %v435 = vmax.f32 %v360, 0.0
      %v436 = vmax.f32 %v363, 0.0
      %v437 = vmax.f32 %v366, 0.0
      %v438 = vmax.f32 %v369, 0.0
      %v439 = vmax.f32 %v372, 0.0
      %v440 = vmax.f32 %v375, 0.0
      %v441 = vmax.f32 %v378, 0.0
      %v442 = vmax.f32 %v381, 0.0
      %v443 = vmax.f32 %v384, 0.0
      %v444 = vmax.f32 %v387, 0.0
      %v445 = vmax.f32 %v390, 0.0
      %v446 = vmax.f32 %v393, 0.0
      %v447 = vmax.f32 %v396, 0.0
      %v448 = vmax.f32 %v399, 0.0
      %v449 = vmax.f32 %v402, 0.0
      %v450 = vmax.f32 %v405, 0.0
      %v451 = vmax.f32 %v408, 0.0
      %v452 = vmax.f32 %v411, 0.0
      %v453 = vmax.f32 %v414, 0.0
      %v454 = vmax.f32 %v417, 0.0
      %v455 = vmax.f32 %v420, 0.0
      %v456 = vmax.f32 %v423, 0.0
      %vm457 = vcmask 130048
      %458 = vst.msk [vmem:[%s172] sm:$0xff] %vm457, %v425
      %459 = vst.msk [vmem:[%s172 + $0x8] sm:$0xff] %vm457, %v426
      %460 = vst.msk [vmem:[%s172 + $0x10] sm:$0xff] %vm457, %v427
      %461 = vst.msk [vmem:[%s172 + $0x18] sm:$0xff] %vm457, %v428
      %462 = vst.msk [vmem:[%s172 + $0x20] sm:$0xff] %vm457, %v429
      %463 = vst.msk [vmem:[%s172 + $0x28] sm:$0xff] %vm457, %v430
      %464 = vst.msk [vmem:[%s172 + $0x30] sm:$0xff] %vm457, %v431
      %465 = vst.msk [vmem:[%s172 + $0x38] sm:$0xff] %vm457, %v432
      %466 = vst.msk [vmem:[%s172 + $0x40] sm:$0xff] %vm457, %v433
      %467 = vst.msk [vmem:[%s172 + $0x48] sm:$0xff] %vm457, %v434
      %468 = vst.msk [vmem:[%s172 + $0x50] sm:$0xff] %vm457, %v435
      %469 = vst.msk [vmem:[%s172 + $0x58] sm:$0xff] %vm457, %v436
      %470 = vst.msk [vmem:[%s172 + $0x60] sm:$0xff] %vm457, %v437
      %471 = vst.msk [vmem:[%s172 + $0x68] sm:$0xff] %vm457, %v438
      %472 = vst.msk [vmem:[%s172 + $0x70] sm:$0xff] %vm457, %v439
      %473 = vst.msk [vmem:[%s172 + $0x78] sm:$0xff] %vm457, %v440
      %474 = vst.msk [vmem:[%s172 + $0x80] sm:$0xff] %vm457, %v441
      %475 = vst.msk [vmem:[%s172 + $0x88] sm:$0xff] %vm457, %v442
      %476 = vst.msk [vmem:[%s172 + $0x90] sm:$0xff] %vm457, %v443
      %477 = vst.msk [vmem:[%s172 + $0x98] sm:$0xff] %vm457, %v444
      %478 = vst.msk [vmem:[%s172 + $0xa0] sm:$0xff] %vm457, %v445
      %479 = vst.msk [vmem:[%s172 + $0xa8] sm:$0xff] %vm457, %v446
      %480 = vst.msk [vmem:[%s172 + $0xb0] sm:$0xff] %vm457, %v447
      %481 = vst.msk [vmem:[%s172 + $0xb8] sm:$0xff] %vm457, %v448
      %482 = vst.msk [vmem:[%s172 + $0xc0] sm:$0xff] %vm457, %v449
      %483 = vst.msk [vmem:[%s172 + $0xc8] sm:$0xff] %vm457, %v450
      %484 = vst.msk [vmem:[%s172 + $0xd0] sm:$0xff] %vm457, %v451
      %485 = vst.msk [vmem:[%s172 + $0xd8] sm:$0xff] %vm457, %v452
      %486 = vst.msk [vmem:[%s172 + $0xe0] sm:$0xff] %vm457, %v453
      %487 = vst.msk [vmem:[%s172 + $0xe8] sm:$0xff] %vm457, %v454
      %488 = vst.msk [vmem:[%s172 + $0xf0] sm:$0xff] %vm457, %v455
      %489 = vst.msk [vmem:[%s172 + $0xf8] sm:$0xff] %vm457, %v456
      %s490 = smul.u32 32, %s14
      %p491 = scmp.lt.s32.totalorder %s490, 63
      %s492 = scalar_select %p491, %s490, 63
      %s493 = smul.addr %s492, 8
      %s494 = scalar_lea.vmem %s3, %s493
      // Predicated region
      $region33: #{inception_forward.4} parent=31 // pred_check
        %p495 = pneg %p100
      $region34: #{inception_forward.4} parent=31 // pred_check_branch
        %497 = sbr.rel (%p495) target = $region36
      $region35: #{inception_forward.4} parent=31 // pred_region
        %s498 = smul.u32 32, %s14
      $region36: #{inception_forward.4} parent=31 // pred_fallthru
        _
    $region32: #{inception_forward.4} parent=5 // pred_fallthru
      _
    %p499 = scmp.le.s32.totalorder 2, %s9
    // Predicated region
    $region37: #{inception_forward.4} parent=5 // pred_check
      %p500 = pneg %p499
    $region38: #{inception_forward.4} parent=5 // pred_check_branch
      %502 = sbr.rel (%p500) target = $region40
    $region39: #{inception_forward.4} parent=5 // pred_region
      %s503 = ssub.s32 %s9, 2
      // Predicated region
      $region41: #{inception_forward.4} parent=39 // pred_check
        %p504 = pneg %p106
      $region42: #{inception_forward.4} parent=39 // pred_check_branch
        %506 = sbr.rel (%p504) target = $region44
      $region43: #{inception_forward.4} parent=39 // pred_region
        %s507 = smul.u32 32, %s15
        %p508 = scmp.lt.s32.totalorder %s507, 63
        %s509 = scalar_select %p508, %s507, 63
        %s510 = smul.addr %s509, 8
        %s511 = scalar_lea.vmem %s3, %s510
      $region44: #{inception_forward.4} parent=39 // pred_fallthru
        _
    $region40: #{inception_forward.4} parent=5 // pred_fallthru
      _
  $region6: #{inception_forward.4} parent=0 // loop_footer
    %s13 = sadd.s32 1, %s9
  $region7: #{inception_forward.4} parent=0 // loop_footer_branch
    %8 = sbr.rel target = $region3
  $region8: #{inception_forward.4} parent=0 // loop_exit
    _

// kernel: inception_forward.5
$region0: #{inception_forward.5}
  #allocation0 [shape = 'u32[]', space=smem, size = 0x4, offset = 0x4, fixed_abs, tag = 'smem constant byte address 0x4 - core index']
  #allocation1 [shape = 'u32[72,128]{1,0:T(1,128)}', space=vmem, size = 0x9000, scoped, tag = 'internal scratch']
  #allocation2 [shape = 'f32[18,16,12]{2,1,0:T(8,128)}', space=vmem, size = 0x24000, scoped, tag = 'scratch operand']
  %s0 = inlined_call_operand.vmem [shape: f32[2,18,18,4], index: 0, kind: input, shape index: {}]
  %s1 = inlined_call_operand.vmem [shape: f32[3,12,8], index: 1, kind: input, shape index: {}]
  %s2 = inlined_call_operand.vmem [shape: f32[1,8], index: 2, kind: input, shape index: {}]
  %s3 = inlined_call_operand.vmem [shape: f32[2,16,16,8], index: 3, kind: output, shape index: {}]
  %s4 = sld [smem:[#allocation0]]
  $region49: #{inception_forward.5} parent=0
    _
  %s6 = ssub.s32 1, %s4
  %s7 = scalar_select 0, %s6, %s4
  loop: start=0, step=1, limit=6
  $region2: #{inception_forward.5} parent=0 // loop_pre_header
    _
  $region3: #{inception_forward.5} parent=0 // loop_header
    %s9 = sphi 0, %s13
    %p10 = scmp.ge.s32.totalorder %s9, 6
    %s16 = sphi 0, %s28
    %s17 = sphi 0, %s24
    %s18 = sphi 0, %s16
    %s19 = sphi 0, %s17
    %s20 = sphi 0, %s18
    %s21 = sphi 0, %s19
    %s31 = sphi 0, %s33
    %s34 = sphi 0, %s31
    %s35 = sphi 0, %s34
    %s51 = sphi 0, %s35
    %s55 = sphi 0, %s55
    %s57 = sphi 0, %s55
    %s58 = sphi 0, %s57
    %s72 = sphi 0, %s58
    %s76 = sphi 0, %s76
    %s78 = sphi 0, %s76
    %s79 = sphi 0, %s78
    %s93 = sphi 0, %s79
    %s101 = sphi 0, %s103
    %s104 = sphi 0, %s101
    %s105 = sphi 0, %s104
    %s121 = sphi 0, %s105
  $region4: #{inception_forward.5} parent=0 // loop_header_branch
    %12 = sbr.rel (%p10) target = $region8
  $region5: #{inception_forward.5} parent=0 // loop_body
    %s14 = ssub.s32 %s9, 1
    %s15 = ssub.s32 %s9, 2
    %s22 = sadd.s32 1, %s17
    %p23 = scmp.ge.s32.totalorder %s22, 2
    %s24 = scalar_select %p23, 0, %s22
    %s25 = sadd.s32 1, %s16
    %s26 = scalar_select %p23, %s25, %s16
    %p27 = scmp.ge.s32.totalorder %s26, 2
    %s28 = scalar_select %p27, 0, %s26
    %s29 = ssub.s32 %s16, %s28
    %p30 = scmp.eq.s32.totalorder %s29, 0
    %s32 = sadd.s32 %s31, 1
    %s33 = scalar_select %p30, %s31, %s32
    %p36 = pneg %p30
    %p37 = scmp.eq.s32.totalorder %s9, 3
    %p38 = por %p36, %p37
    %p39 = scmp.ne.s32.totalorder %s31, %s34
    %p40 = scmp.eq.s32.totalorder %s9, 0
    %p41 = por %p39, %p40
    %p42 = scmp.ne.s32.totalorder %s31, %s34
    %p43 = scmp.eq.s32.totalorder %s14, 3
    %p44 = por %p42, %p43
    %p45 = scmp.ne.s32.totalorder %s34, %s35
    %p46 = scmp.eq.s32.totalorder %s14, 0
    %p47 = por %p45, %p46
    %p48 = scmp.ne.s32.totalorder %s34, %s35
    %p49 = scmp.eq.s32.totalorder %s15, 3
    %p50 = por %p48, %p49
    %p52 = scmp.ne.s32.totalorder %s35, %s51
    %p53 = scmp.eq.s32.totalorder %s15, 0
    %p54 = por %p52, %p53
    %s56 = sadd.s32 %s55, 1
    %p59 = scmp.eq.s32.totalorder %s9, 3
    %p60 = scmp.ne.s32.totalorder %s55, %s57
    %p61 = scmp.eq.s32.totalorder %s9, 0
    %p62 = por %p60, %p61
    %p63 = scmp.ne.s32.totalorder %s55, %s57
    %p64 = scmp.eq.s32.totalorder %s14, 3
    %p65 = por %p63, %p64
    %p66 = scmp.ne.s32.totalorder %s57, %s58
    %p67 = scmp.eq.s32.totalorder %s14, 0
    %p68 = por %p66, %p67
    %p69 = scmp.ne.s32.totalorder %s57, %s58
    %p70 = scmp.eq.s32.totalorder %s15, 3
    %p71 = por %p69, %p70
    %p73 = scmp.ne.s32.totalorder %s58, %s72
    %p74 = scmp.eq.s32.totalorder %s15, 0
    %p75 = por %p73, %p74
    %s77 = sadd.s32 %s76, 1
    %p80 = scmp.eq.s32.totalorder %s9, 3
    %p81 = scmp.ne.s32.totalorder %s76, %s78
    %p82 = scmp.eq.s32.totalorder %s9, 0
    %p83 = por %p81, %p82
    %p84 = scmp.ne.s32.totalorder %s76, %s78
    %p85 = scmp.eq.s32.totalorder %s14, 3
    %p86 = por %p84, %p85
    %p87 = scmp.ne.s32.totalorder %s78, %s79
    %p88 = scmp.eq.s32.totalorder %s14, 0
    %p89 = por %p87, %p88
    %p90 = scmp.ne.s32.totalorder %s78, %s79
    %p91 = scmp.eq.s32.totalorder %s15, 3
    %p92 = por %p90, %p91
    %p94 = scmp.ne.s32.totalorder %s79, %s93
    %p95 = scmp.eq.s32.totalorder %s15, 0
    %p96 = por %p94, %p95
    %s97 = ssub.s32 %s16, %s28
    %s98 = ssub.s32 %s17, %s24
    %s99 = sor.u32 %s97, %s98
    %p100 = scmp.eq.s32.totalorder %s99, 0
    %s102 = sadd.s32 %s101, 1
    %s103 = scalar_select %p100, %s101, %s102
    %p106 = pneg %p100
    %p107 = scmp.eq.s32.totalorder %s9, 3
    %p108 = por %p106, %p107
    %p109 = scmp.ne.s32.totalorder %s101, %s104
    %p110 = scmp.eq.s32.totalorder %s9, 0
    %p111 = por %p109, %p110
    %p112 = scmp.ne.s32.totalorder %s101, %s104
    %p113 = scmp.eq.s32.totalorder %s14, 3
    %p114 = por %p112, %p113
    %p115 = scmp.ne.s32.totalorder %s104, %s105
    %p116 = scmp.eq.s32.totalorder %s14, 0
    %p117 = por %p115, %p116
    %p118 = scmp.ne.s32.totalorder %s104, %s105
    %p119 = scmp.eq.s32.totalorder %s15, 3
    %p120 = por %p118, %p119
    %p122 = scmp.ne.s32.totalorder %s105, %s121
    %p123 = scmp.eq.s32.totalorder %s15, 0
    %p124 = por %p122, %p123
    %p125 = scmp.le.s32.totalorder 1, %s9
    %p126 = scmp.lt.s32.totalorder %s9, 5
    %p127 = pnand %p125, %p126
    %p128 = pneg %p127
    // Predicated region
    $region9: #{inception_forward.5} parent=5 // pred_check
      _
    $region10: #{inception_forward.5} parent=5 // pred_check_branch
      %130 = sbr.rel (%p127) target = $region12
    $region11: #{inception_forward.5} parent=5 // pred_region
      %s131 = ssub.s32 %s9, 1
      // Predicated region
      $region13: #{inception_forward.5} parent=11 // pred_check
        %p132 = pneg %p68
      $region14: #{inception_forward.5} parent=11 // pred_check_branch
        %134 = sbr.rel (%p132) target = $region16
      $region15: #{inception_forward.5} parent=11 // pred_region
        _
      $region16: #{inception_forward.5} parent=11 // pred_fallthru
        _
      // Predicated region
      $region17: #{inception_forward.5} parent=11 // pred_check
        %p135 = pneg %p89
      $region18: #{inception_forward.5} parent=11 // pred_check_branch
        %137 = sbr.rel (%p135) target = $region20
      $region19: #{inception_forward.5} parent=11 // pred_region
        _
      $region20: #{inception_forward.5} parent=11 // pred_fallthru
        _
    $region12: #{inception_forward.5} parent=5 // pred_fallthru
      _
    %p138 = scmp.lt.s32.totalorder %s9, 4
    // Predicated region
    $region21: #{inception_forward.5} parent=5 // pred_check
      %p139 = pneg %p138
    $region22: #{inception_forward.5} parent=5 // pred_check_branch
      %141 = sbr.rel (%p139) target = $region24
    $region23: #{inception_forward.5} parent=5 // pred_region
      // Predicated region
      $region25: #{inception_forward.5} parent=23 // pred_check
        %p142 = pneg %p41
      $region26: #{inception_forward.5} parent=23 // pred_check_branch
        %144 = sbr.rel (%p142) target = $region28
      $region27: #{inception_forward.5} parent=23 // pred_region
        %p145 = scmp.lt.s32.totalorder %s16, 1
        %s146 = scalar_select %p145, %s16, 1
        %s147 = smul.addr %s146, 54
        %s148 = smul.addr %s147, 8
        %s149 = scalar_lea.vmem %s0, %s148
      $region28: #{inception_forward.5} parent=23 // pred_fallthru
        _
    $region24: #{inception_forward.5} parent=5 // pred_fallthru
      _
    %p150 = scmp.le.s32.totalorder 1, %s9
    %p151 = scmp.lt.s32.totalorder %s9, 5
    %p152 = pnand %p150, %p151
    %p153 = pneg %p152
    // Predicated region
    $region29: #{inception_forward.5} parent=5 // pred_check
      _
    $region30: #{inception_forward.5} parent=5 // pred_check_branch
      %155 = sbr.rel (%p152) target = $region32
    $region31: #{inception_forward.5} parent=5 // pred_region
      %s156 = ssub.s32 %s9, 1
      %p157 = scmp.lt.s32.totalorder %s18, 1
      %s158 = scalar_select %p157, %s18, 1
      %s159 = smul.addr %s158, 54
      %s160 = smul.addr %s159, 8
      %s161 = scalar_lea.vmem %s0, %s160
      %p162 = pneg %p47
      %p163 = pneg %p44
      %p164 = pneg %p68
      %p165 = pneg %p65
      %p166 = pneg %p89
      %p167 = pneg %p86
      %p168 = pneg %p117
      %p169 = pneg %p114
      %s170 = smul.u32 8, %s19
      %p171 = scmp.lt.s32.totalorder %s18, 1
      %s172 = scalar_select %p171, %s18, 1
      %p173 = scmp.lt.s32.totalorder %s170, 15
      %s174 = scalar_select %p173, %s170, 15
      %s175 = smul.addr %s174, 2
      %s176 = smul.addr %s172, 32
      %s177 = sadd.s32 %s175, %s176
      %s178 = smul.addr %s177, 8
      %s179 = scalar_lea.vmem %s3, %s178
      %p180 = scmp.lt.s32.totalorder %s18, 1
      %s181 = scalar_select %p180, %s18, 1
      %s182 = smul.addr %s181, 54
      %s183 = smul.addr %s182, 8
      %s184 = scalar_lea.vmem %s0, %s183
      %s185 = smul.u32 8, %s19
      %p186 = scmp.lt.s32.totalorder %s18, 1
      %s187 = scalar_select %p186, %s18, 1
      %p188 = scmp.lt.s32.totalorder %s185, 15
      %s189 = scalar_select %p188, %s185, 15
      %s190 = smul.addr %s189, 2
      %s191 = smul.addr %s187, 32
      %s192 = sadd.s32 %s190, %s191
      %s193 = smul.addr %s192, 8
      %s194 = scalar_lea.vmem %s3, %s193
      %s195 = smul.u32 8, %s19
      %p196 = scmp.eq.s32.totalorder %s19, 0
      // Predicated region
      $region33: #{inception_forward.5} parent=31 // pred_check
        %p197 = pneg %p196
      $region34: #{inception_forward.5} parent=31 // pred_check_branch
        %199 = sbr.rel (%p197) target = $region36
      $region35: #{inception_forward.5} parent=31 // pred_region
        %v200 = vld [vmem:[%s184] sm:$0xff]
        %v201 = vld [vmem:[%s184 + $0x8] sm:$0xff]
        %v202 = vld [vmem:[%s184 + $0x18] sm:$0xff]
        %v203 = vld [vmem:[%s184 + $0x20] sm:$0xff]
        %v204 = vld [vmem:[%s184 + $0x30] sm:$0xff]
        %v205 = vld [vmem:[%s184 + $0x38] sm:$0xff]
        %v206 = vld [vmem:[%s184 + $0x48] sm:$0xff]
        %v207 = vld [vmem:[%s184 + $0x50] sm:$0xff]
        %v208 = vld [vmem:[%s184 + $0x60] sm:$0xff]
        %v209 = vld [vmem:[%s184 + $0x68] sm:$0xff]
        %v210 = vld [vmem:[%s184 + $0x78] sm:$0xff]
        %v211 = vld [vmem:[%s184 + $0x80] sm:$0xff]
        %v212 = vld [vmem:[%s184 + $0x90] sm:$0xff]
        %v213 = vld [vmem:[%s184 + $0x98] sm:$0xff]
        %v214 = vld [vmem:[%s184 + $0xa8] sm:$0xff]
        %v215 = vld [vmem:[%s184 + $0xb0] sm:$0xff]
        %v216 = vld [vmem:[%s184 + $0xc0] sm:$0xff]
        %v217 = vld [vmem:[%s184 + $0xc8] sm:$0xff]
        %v218 = vld [vmem:[%s184 + $0xd8] sm:$0xff]
        %v219 = vld [vmem:[%s184 + $0xe0] sm:$0xff]
        %v220 = vld [vmem:[%s184 + $0xf0] sm:$0xff]
        %v221 = vld [vmem:[%s184 + $0xf8] sm:$0xff]
        %v222 = vld [vmem:[%s184 + $0x108] sm:$0xff]
        %v223 = vld [vmem:[%s184 + $0x110] sm:$0xff]
        %v224 = vld [vmem:[%s184 + $0x120] sm:$0xff]
        %v225 = vld [vmem:[%s184 + $0x128] sm:$0xff]
        %v226 = vld [vmem:[%s184 + $0x138] sm:$0xff]
        %v227 = vld [vmem:[%s184 + $0x140] sm:$0xff]
        %v228 = vld [vmem:[%s184 + $0x150] sm:$0xff]
        %v229 = vld [vmem:[%s184 + $0x158] sm:$0xff]
        %v230 = vld [vmem:[%s184 + $0x168] sm:$0xff]
        %v231 = vld [vmem:[%s184 + $0x170] sm:$0xff]
        %v232 = vld [vmem:[%s184 + $0x180] sm:$0xff]
        %v233 = vld [vmem:[%s184 + $0x188] sm:$0xff]
        %v234 = vld [vmem:[%s184 + $0x198] sm:$0xff]
        %v235 = vld [vmem:[%s184 + $0x1a0] sm:$0xff]
        %v236 = vld [vmem:[%s184 + $0x1] sm:$0xff]
        %v237 = vld [vmem:[%s184 + $0x9] sm:$0xff]
        %v238 = vld [vmem:[%s184 + $0x19] sm:$0xff]
        %v239 = vld [vmem:[%s184 + $0x21] sm:$0xff]
        %v240 = vld [vmem:[%s184 + $0x31] sm:$0xff]
        %v241 = vld [vmem:[%s184 + $0x39] sm:$0xff]
        %v242 = vld [vmem:[%s184 + $0x49] sm:$0xff]
        %v243 = vld [vmem:[%s184 + $0x51] sm:$0xff]
        %v244 = vld [vmem:[%s184 + $0x61] sm:$0xff]
        %v245 = vld [vmem:[%s184 + $0x69] sm:$0xff]
        %v246 = vld [vmem:[%s184 + $0x79] sm:$0xff]
        %v247 = vld [vmem:[%s184 + $0x81] sm:$0xff]
        %v248 = vld [vmem:[%s184 + $0x91] sm:$0xff]
        %v249 = vld [vmem:[%s184 + $0x99] sm:$0xff]
        %v250 = vld [vmem:[%s184 + $0xa9] sm:$0xff]
        %v251 = vld [vmem:[%s184 + $0xb1] sm:$0xff]
        %v252 = vld [vmem:[%s184 + $0xc1] sm:$0xff]
        %v253 = vld [vmem:[%s184 + $0xc9] sm:$0xff]
        %v254 = vld [vmem:[%s184 + $0xd9] sm:$0xff]
        %v255 = vld [vmem:[%s184 + $0xe1] sm:$0xff]
        %v256 = vld [vmem:[%s184 + $0xf1] sm:$0xff]
        %v257 = vld [vmem:[%s184 + $0xf9] sm:$0xff]
        %v258 = vld [vmem:[%s184 + $0x109] sm:$0xff]
        %v259 = vld [vmem:[%s184 + $0x111] sm:$0xff]
        %v260 = vld [vmem:[%s184 + $0x121] sm:$0xff]
        %v261 = vld [vmem:[%s184 + $0x129] sm:$0xff]
        %v262 = vld [vmem:[%s184 + $0x139] sm:$0xff]
        %v263 = vld [vmem:[%s184 + $0x141] sm:$0xff]
        %v264 = vld [vmem:[%s184 + $0x151] sm:$0xff]
        %v265 = vld [vmem:[%s184 + $0x159] sm:$0xff]
        %v266 = vld [vmem:[%s184 + $0x169] sm:$0xff]
        %v267 = vld [vmem:[%s184 + $0x171] sm:$0xff]
        %v268 = vld [vmem:[%s184 + $0x181] sm:$0xff]
        %v269 = vld [vmem:[%s184 + $0x189] sm:$0xff]
        %v270 = vld [vmem:[%s184 + $0x199] sm:$0xff]
        %v271 = vld [vmem:[%s184 + $0x1a1] sm:$0xff]
        %v272 = vld [vmem:[%s184 + $0x2] sm:$0xff]
        %v273 = vld [vmem:[%s184 + $0xa] sm:$0xff]
        %v274 = vld [vmem:[%s184 + $0x1a] sm:$0xff]
        %v275 = vld [vmem:[%s184 + $0x22] sm:$0xff]
        %v276 = vld [vmem:[%s184 + $0x32] sm:$0xff]
        %v277 = vld [vmem:[%s184 + $0x3a] sm:$0xff]
        %v278 = vld [vmem:[%s184 + $0x4a] sm:$0xff]
        %v279 = vld [vmem:[%s184 + $0x52] sm:$0xff]
        %v280 = vld [vmem:[%s184 + $0x62] sm:$0xff]
        %v281 = vld [vmem:[%s184 + $0x6a] sm:$0xff]
        %v282 = vld [vmem:[%s184 + $0x7a] sm:$0xff]
        %v283 = vld [vmem:[%s184 + $0x82] sm:$0xff]
        %v284 = vld [vmem:[%s184 + $0x92] sm:$0xff]
        %v285 = vld [vmem:[%s184 + $0x9a] sm:$0xff]
        %v286 = vld [vmem:[%s184 + $0xaa] sm:$0xff]
        %v287 = vld [vmem:[%s184 + $0xb2] sm:$0xff]
        %v288 = vld [vmem:[%s184 + $0xc2] sm:$0xff]
        %v289 = vld [vmem:[%s184 + $0xca] sm:$0xff]
        %v290 = vld [vmem:[%s184 + $0xda] sm:$0xff]
        %v291 = vld [vmem:[%s184 + $0xe2] sm:$0xff]
        %v292 = vld [vmem:[%s184 + $0xf2] sm:$0xff]
        %v293 = vld [vmem:[%s184 + $0xfa] sm:$0xff]
        %v294 = vld [vmem:[%s184 + $0x10a] sm:$0xff]
        %v295 = vld [vmem:[%s184 + $0x112] sm:$0xff]
        %v296 = vld [vmem:[%s184 + $0x122] sm:$0xff]
        %v297 = vld [vmem:[%s184 + $0x12a] sm:$0xff]
        %v298 = vld [vmem:[%s184 + $0x13a] sm:$0xff]
        %v299 = vld [vmem:[%s184 + $0x142] sm:$0xff]
        %v300 = vld [vmem:[%s184 + $0x152] sm:$0xff]
        %v301 = vld [vmem:[%s184 + $0x15a] sm:$0xff]
        %v302 = vld [vmem:[%s184 + $0x16a] sm:$0xff]
        %v303 = vld [vmem:[%s184 + $0x172] sm:$0xff]
        %v304 = vld [vmem:[%s184 + $0x182] sm:$0xff]
        %v305 = vld [vmem:[%s184 + $0x18a] sm:$0xff]
        %v306 = vld [vmem:[%s184 + $0x19a] sm:$0xff]
        %v307 = vld [vmem:[%s184 + $0x1a2] sm:$0xff]
        %344 = vrot.lane.b32.xlu0 %v236, 4
        %v345 = vpop.permute.xlu0 %344
        %346 = vrot.lane.b32.xlu0 %v237, 4
        %v347 = vpop.permute.xlu0 %346
        %348 = vrot.lane.b32.xlu0 %v238, 4
        %v349 = vpop.permute.xlu0 %348
        %350 = vrot.lane.b32.xlu0 %v239, 4
        %v351 = vpop.permute.xlu0 %350
        %352 = vrot.lane.b32.xlu0 %v240, 4
        %v353 = vpop.permute.xlu0 %352
        %354 = vrot.lane.b32.xlu0 %v241, 4
        %v355 = vpop.permute.xlu0 %354
        %356 = vrot.lane.b32.xlu0 %v242, 4
        %v357 = vpop.permute.xlu0 %356
        %358 = vrot.lane.b32.xlu0 %v243, 4
        %v359 = vpop.permute.xlu0 %358
        %360 = vrot.lane.b32.xlu0 %v244, 4
        %v361 = vpop.permute.xlu0 %360
        %362 = vrot.lane.b32.xlu0 %v245, 4
        %v363 = vpop.permute.xlu0 %362
        %364 = vrot.lane.b32.xlu0 %v246, 4
        %v365 = vpop.permute.xlu0 %364
        %366 = vrot.lane.b32.xlu0 %v247, 4
        %v367 = vpop.permute.xlu0 %366
        %368 = vrot.lane.b32.xlu0 %v248, 4
        %v369 = vpop.permute.xlu0 %368
        %370 = vrot.lane.b32.xlu0 %v249, 4
        %v371 = vpop.permute.xlu0 %370
        %372 = vrot.lane.b32.xlu0 %v250, 4
        %v373 = vpop.permute.xlu0 %372
        %374 = vrot.lane.b32.xlu0 %v251, 4
        %v375 = vpop.permute.xlu0 %374
        %376 = vrot.lane.b32.xlu0 %v252, 4
        %v377 = vpop.permute.xlu0 %376
        %378 = vrot.lane.b32.xlu0 %v253, 4
        %v379 = vpop.permute.xlu0 %378
        %380 = vrot.lane.b32.xlu0 %v254, 4
        %v381 = vpop.permute.xlu0 %380
        %382 = vrot.lane.b32.xlu0 %v255, 4
        %v383 = vpop.permute.xlu0 %382
        %384 = vrot.lane.b32.xlu0 %v256, 4
        %v385 = vpop.permute.xlu0 %384
        %386 = vrot.lane.b32.xlu0 %v257, 4
        %v387 = vpop.permute.xlu0 %386
        %388 = vrot.lane.b32.xlu0 %v258, 4
        %v389 = vpop.permute.xlu0 %388
        %390 = vrot.lane.b32.xlu0 %v259, 4
        %v391 = vpop.permute.xlu0 %390
        %392 = vrot.lane.b32.xlu0 %v260, 4
        %v393 = vpop.permute.xlu0 %392
        %394 = vrot.lane.b32.xlu0 %v261, 4
        %v395 = vpop.permute.xlu0 %394
        %396 = vrot.lane.b32.xlu0 %v262, 4
        %v397 = vpop.permute.xlu0 %396
        %398 = vrot.lane.b32.xlu0 %v263, 4
        %v399 = vpop.permute.xlu0 %398
        %400 = vrot.lane.b32.xlu0 %v264, 4
        %v401 = vpop.permute.xlu0 %400
        %402 = vrot.lane.b32.xlu0 %v265, 4
        %v403 = vpop.permute.xlu0 %402
        %404 = vrot.lane.b32.xlu0 %v266, 4
        %v405 = vpop.permute.xlu0 %404
        %406 = vrot.lane.b32.xlu0 %v267, 4
        %v407 = vpop.permute.xlu0 %406
        %408 = vrot.lane.b32.xlu0 %v268, 4
        %v409 = vpop.permute.xlu0 %408
        %410 = vrot.lane.b32.xlu0 %v269, 4
        %v411 = vpop.permute.xlu0 %410
        %412 = vrot.lane.b32.xlu0 %v270, 4
        %v413 = vpop.permute.xlu0 %412
        %414 = vrot.lane.b32.xlu0 %v271, 4
        %v415 = vpop.permute.xlu0 %414
        %488 = vrot.lane.b32.xlu0 %v272, 8
        %v489 = vpop.permute.xlu0 %488
        %490 = vrot.lane.b32.xlu0 %v273, 8
        %v491 = vpop.permute.xlu0 %490
        %492 = vrot.lane.b32.xlu0 %v274, 8
        %v493 = vpop.permute.xlu0 %492
        %494 = vrot.lane.b32.xlu0 %v275, 8
        %v495 = vpop.permute.xlu0 %494
        %496 = vrot.lane.b32.xlu0 %v276, 8
        %v497 = vpop.permute.xlu0 %496
        %498 = vrot.lane.b32.xlu0 %v277, 8
        %v499 = vpop.permute.xlu0 %498
        %500 = vrot.lane.b32.xlu0 %v278, 8
        %v501 = vpop.permute.xlu0 %500
        %502 = vrot.lane.b32.xlu0 %v279, 8
        %v503 = vpop.permute.xlu0 %502
        %504 = vrot.lane.b32.xlu0 %v280, 8
        %v505 = vpop.permute.xlu0 %504
        %506 = vrot.lane.b32.xlu0 %v281, 8
        %v507 = vpop.permute.xlu0 %506
        %508 = vrot.lane.b32.xlu0 %v282, 8
        %v509 = vpop.permute.xlu0 %508
        %510 = vrot.lane.b32.xlu0 %v283, 8
        %v511 = vpop.permute.xlu0 %510
        %512 = vrot.lane.b32.xlu0 %v284, 8
        %v513 = vpop.permute.xlu0 %512
        %514 = vrot.lane.b32.xlu0 %v285, 8
        %v515 = vpop.permute.xlu0 %514
        %516 = vrot.lane.b32.xlu0 %v286, 8
        %v517 = vpop.permute.xlu0 %516
        %518 = vrot.lane.b32.xlu0 %v287, 8
        %v519 = vpop.permute.xlu0 %518
        %520 = vrot.lane.b32.xlu0 %v288, 8
        %v521 = vpop.permute.xlu0 %520
        %522 = vrot.lane.b32.xlu0 %v289, 8
        %v523 = vpop.permute.xlu0 %522
        %524 = vrot.lane.b32.xlu0 %v290, 8
        %v525 = vpop.permute.xlu0 %524
        %526 = vrot.lane.b32.xlu0 %v291, 8
        %v527 = vpop.permute.xlu0 %526
        %528 = vrot.lane.b32.xlu0 %v292, 8
        %v529 = vpop.permute.xlu0 %528
        %530 = vrot.lane.b32.xlu0 %v293, 8
        %v531 = vpop.permute.xlu0 %530
        %532 = vrot.lane.b32.xlu0 %v294, 8
        %v533 = vpop.permute.xlu0 %532
        %534 = vrot.lane.b32.xlu0 %v295, 8
        %v535 = vpop.permute.xlu0 %534
        %536 = vrot.lane.b32.xlu0 %v296, 8
        %v537 = vpop.permute.xlu0 %536
        %538 = vrot.lane.b32.xlu0 %v297, 8
        %v539 = vpop.permute.xlu0 %538
        %540 = vrot.lane.b32.xlu0 %v298, 8
        %v541 = vpop.permute.xlu0 %540
        %542 = vrot.lane.b32.xlu0 %v299, 8
        %v543 = vpop.permute.xlu0 %542
        %544 = vrot.lane.b32.xlu0 %v300, 8
        %v545 = vpop.permute.xlu0 %544
        %546 = vrot.lane.b32.xlu0 %v301, 8
        %v547 = vpop.permute.xlu0 %546
        %548 = vrot.lane.b32.xlu0 %v302, 8
        %v549 = vpop.permute.xlu0 %548
        %550 = vrot.lane.b32.xlu0 %v303, 8
        %v551 = vpop.permute.xlu0 %550
        %552 = vrot.lane.b32.xlu0 %v304, 8
        %v553 = vpop.permute.xlu0 %552
        %554 = vrot.lane.b32.xlu0 %v305, 8
        %v555 = vpop.permute.xlu0 %554
        %556 = vrot.lane.b32.xlu0 %v306, 8
        %v557 = vpop.permute.xlu0 %556
        %558 = vrot.lane.b32.xlu0 %v307, 8
        %v559 = vpop.permute.xlu0 %558
        %vm596 = vcmask 31744
        %v597 = vsel %vm596, %v200, %v345
        %v598 = vsel %vm596, %v201, %v347
        %v599 = vsel %vm596, %v202, %v349
        %v600 = vsel %vm596, %v203, %v351
        %v601 = vsel %vm596, %v204, %v353
        %v602 = vsel %vm596, %v205, %v355
        %v603 = vsel %vm596, %v206, %v357
        %v604 = vsel %vm596, %v207, %v359
        %v605 = vsel %vm596, %v208, %v361
        %v606 = vsel %vm596, %v209, %v363
        %v607 = vsel %vm596, %v210, %v365
        %v608 = vsel %vm596, %v211, %v367
        %v609 = vsel %vm596, %v212, %v369
        %v610 = vsel %vm596, %v213, %v371
        %v611 = vsel %vm596, %v214, %v373
        %v612 = vsel %vm596, %v215, %v375
        %v613 = vsel %vm596, %v216, %v377
        %v614 = vsel %vm596, %v217, %v379
        %v615 = vsel %vm596, %v218, %v381
        %v616 = vsel %vm596, %v219, %v383
        %v617 = vsel %vm596, %v220, %v385
        %v618 = vsel %vm596, %v221, %v387
        %v619 = vsel %vm596, %v222, %v389
        %v620 = vsel %vm596, %v223, %v391
        %v621 = vsel %vm596, %v224, %v393
        %v622 = vsel %vm596, %v225, %v395
        %v623 = vsel %vm596, %v226, %v397
        %v624 = vsel %vm596, %v227, %v399
        %v625 = vsel %vm596, %v228, %v401
        %v626 = vsel %vm596, %v229, %v403
        %v627 = vsel %vm596, %v230, %v405
        %v628 = vsel %vm596, %v231, %v407
        %v629 = vsel %vm596, %v232, %v409
        %v630 = vsel %vm596, %v233, %v411
        %v631 = vsel %vm596, %v234, %v413
        %v632 = vsel %vm596, %v235, %v415
        %vm633 = vcmask 64512
        %v634 = vsel %vm633, %v597, %v489
        %v635 = vsel %vm633, %v598, %v491
        %v636 = vsel %vm633, %v599, %v493
        %v637 = vsel %vm633, %v600, %v495
        %v638 = vsel %vm633, %v601, %v497
        %v639 = vsel %vm633, %v602, %v499
        %v640 = vsel %vm633, %v603, %v501
        %v641 = vsel %vm633, %v604, %v503
        %v642 = vsel %vm633, %v605, %v505
        %v643 = vsel %vm633, %v606, %v507
        %v644 = vsel %vm633, %v607, %v509
        %v645 = vsel %vm633, %v608, %v511
        %v646 = vsel %vm633, %v609, %v513
        %v647 = vsel %vm633, %v610, %v515
        %v648 = vsel %vm633, %v611, %v517
        %v649 = vsel %vm633, %v612, %v519
        %v650 = vsel %vm633, %v613, %v521
        %v651 = vsel %vm633, %v614, %v523
        %v652 = vsel %vm633, %v615, %v525
        %v653 = vsel %vm633, %v616, %v527
        %v654 = vsel %vm633, %v617, %v529
        %v655 = vsel %vm633, %v618, %v531
        %v656 = vsel %vm633, %v619, %v533
        %v657 = vsel %vm633, %v620, %v535
        %v658 = vsel %vm633, %v621, %v537
        %v659 = vsel %vm633, %v622, %v539
        %v660 = vsel %vm633, %v623, %v541
        %v661 = vsel %vm633, %v624, %v543
        %v662 = vsel %vm633, %v625, %v545
        %v663 = vsel %vm633, %v626, %v547
        %v664 = vsel %vm633, %v627, %v549
        %v665 = vsel %vm633, %v628, %v551
        %v666 = vsel %vm633, %v629, %v553
        %v667 = vsel %vm633, %v630, %v555
        %v668 = vsel %vm633, %v631, %v557
        %v669 = vsel %vm633, %v632, %v559
        %vm670 = vcmask 97280
        %671 = vst.msk [vmem:[#allocation2] sm:$0xff] %vm670, %v634
        %672 = vst.msk [vmem:[#allocation2 + $0x8] sm:$0xff] %vm670, %v635
        %673 = vst.msk [vmem:[#allocation2 + $0x10] sm:$0xff] %vm670, %v636
        %674 = vst.msk [vmem:[#allocation2 + $0x18] sm:$0xff] %vm670, %v637
        %675 = vst.msk [vmem:[#allocation2 + $0x20] sm:$0xff] %vm670, %v638
        %676 = vst.msk [vmem:[#allocation2 + $0x28] sm:$0xff] %vm670, %v639
        %677 = vst.msk [vmem:[#allocation2 + $0x30] sm:$0xff] %vm670, %v640
        %678 = vst.msk [vmem:[#allocation2 + $0x38] sm:$0xff] %vm670, %v641
        %679 = vst.msk [vmem:[#allocation2 + $0x40] sm:$0xff] %vm670, %v642
        %680 = vst.msk [vmem:[#allocation2 + $0x48] sm:$0xff] %vm670, %v643
        %681 = vst.msk [vmem:[#allocation2 + $0x50] sm:$0xff] %vm670, %v644
        %682 = vst.msk [vmem:[#allocation2 + $0x58] sm:$0xff] %vm670, %v645
        %683 = vst.msk [vmem:[#allocation2 + $0x60] sm:$0xff] %vm670, %v646
        %684 = vst.msk [vmem:[#allocation2 + $0x68] sm:$0xff] %vm670, %v647
        %685 = vst.msk [vmem:[#allocation2 + $0x70] sm:$0xff] %vm670, %v648
        %686 = vst.msk [vmem:[#allocation2 + $0x78] sm:$0xff] %vm670, %v649
        %687 = vst.msk [vmem:[#allocation2 + $0x80] sm:$0xff] %vm670, %v650
        %688 = vst.msk [vmem:[#allocation2 + $0x88] sm:$0xff] %vm670, %v651
        %689 = vst.msk [vmem:[#allocation2 + $0x90] sm:$0xff] %vm670, %v652
        %690 = vst.msk [vmem:[#allocation2 + $0x98] sm:$0xff] %vm670, %v653
        %691 = vst.msk [vmem:[#allocation2 + $0xa0] sm:$0xff] %vm670, %v654
        %692 = vst.msk [vmem:[#allocation2 + $0xa8] sm:$0xff] %vm670, %v655
        %693 = vst.msk [vmem:[#allocation2 + $0xb0] sm:$0xff] %vm670, %v656
        %694 = vst.msk [vmem:[#allocation2 + $0xb8] sm:$0xff] %vm670, %v657
        %695 = vst.msk [vmem:[#allocation2 + $0xc0] sm:$0xff] %vm670, %v658
        %696 = vst.msk [vmem:[#allocation2 + $0xc8] sm:$0xff] %vm670, %v659
        %697 = vst.msk [vmem:[#allocation2 + $0xd0] sm:$0xff] %vm670, %v660
        %698 = vst.msk [vmem:[#allocation2 + $0xd8] sm:$0xff] %vm670, %v661
        %699 = vst.msk [vmem:[#allocation2 + $0xe0] sm:$0xff] %vm670, %v662
        %700 = vst.msk [vmem:[#allocation2 + $0xe8] sm:$0xff] %vm670, %v663
        %701 = vst.msk [vmem:[#allocation2 + $0xf0] sm:$0xff] %vm670, %v664
        %702 = vst.msk [vmem:[#allocation2 + $0xf8] sm:$0xff] %vm670, %v665
        %703 = vst.msk [vmem:[#allocation2 + $0x100] sm:$0xff] %vm670, %v666
        %704 = vst.msk [vmem:[#allocation2 + $0x108] sm:$0xff] %vm670, %v667
        %705 = vst.msk [vmem:[#allocation2 + $0x110] sm:$0xff] %vm670, %v668
        %706 = vst.msk [vmem:[#allocation2 + $0x118] sm:$0xff] %vm670, %v669
      $region36: #{inception_forward.5} parent=31 // pred_fallthru
        _
      %s707 = smul.u32 %s19, 8
      %s708 = smul.u32 %s707, 16
      %s709 = scalar_lea.vmem [#allocation2], %s708
      %v710 = vld [vmem:[%s709] sm:$0xff]
      %v711 = vld [vmem:[%s709 + $0x8] sm:$0xff]
      %v712 = vld [vmem:[%s709 + $0x10] sm:$0xff]
      %v713 = vld [vmem:[%s709 + $0x18] sm:$0xff]
      %v714 = vld [vmem:[%s709 + $0x20] sm:$0xff]
      %v715 = vld [vmem:[%s709 + $0x28] sm:$0xff]
      %v716 = vld [vmem:[%s709 + $0x30] sm:$0xff]
      %v717 = vld [vmem:[%s709 + $0x38] sm:$0xff]
      %v718 = vld [vmem:[%s709 + $0x40] sm:$0xff]
      %v719 = vld [vmem:[%s709 + $0x48] sm:$0xff]
      %v720 = vld [vmem:[%s709 + $0x50] sm:$0xff]
      %v721 = vld [vmem:[%s709 + $0x58] sm:$0xff]
      %v722 = vld [vmem:[%s709 + $0x60] sm:$0xff]
      %v723 = vld [vmem:[%s709 + $0x68] sm:$0xff]
      %v724 = vld [vmem:[%s709 + $0x70] sm:$0xff]
      %v725 = vld [vmem:[%s709 + $0x78] sm:$0xff]
      %v726 = vld [vmem:[%s1] sm:$0xff]
      %v727 = vld [vmem:[%s1 + $0x8] sm:$0xf]
      %s728 = sadd.s32 %s707, 1
      %s729 = smul.u32 %s728, 16
      %s730 = scalar_lea.vmem [#allocation2], %s729
      %v731 = vld [vmem:[%s730] sm:$0xff]
      %v732 = vld [vmem:[%s730 + $0x8] sm:$0xff]
      %v733 = vld [vmem:[%s730 + $0x10] sm:$0xff]
      %v734 = vld [vmem:[%s730 + $0x18] sm:$0xff]
      %v735 = vld [vmem:[%s730 + $0x20] sm:$0xff]
      %v736 = vld [vmem:[%s730 + $0x28] sm:$0xff]
      %v737 = vld [vmem:[%s730 + $0x30] sm:$0xff]
      %v738 = vld [vmem:[%s730 + $0x38] sm:$0xff]
      %v739 = vld [vmem:[%s730 + $0x40] sm:$0xff]
      %v740 = vld [vmem:[%s730 + $0x48] sm:$0xff]
      %v741 = vld [vmem:[%s730 + $0x50] sm:$0xff]
      %v742 = vld [vmem:[%s730 + $0x58] sm:$0xff]
      %v743 = vld [vmem:[%s730 + $0x60] sm:$0xff]
      %v744 = vld [vmem:[%s730 + $0x68] sm:$0xff]
      %v745 = vld [vmem:[%s730 + $0x70] sm:$0xff]
      %v746 = vld [vmem:[%s730 + $0x78] sm:$0xff]
      %s747 = scalar_lea.vmem %s1, 16
      %v748 = vld [vmem:[%s747] sm:$0xff]
      %v749 = vld [vmem:[%s747 + $0x8] sm:$0xf]
      %vm750 = vcmask 97280
      %v752 = vsel %vm750, %v731, 0
      %v755 = vsel %vm750, %v732, 0
      %v758 = vsel %vm750, %v733, 0
      %v761 = vsel %vm750, %v734, 0
      %v764 = vsel %vm750, %v735, 0
      %v767 = vsel %vm750, %v736, 0
      %v770 = vsel %vm750, %v737, 0
      %v773 = vsel %vm750, %v738, 0
      %v776 = vsel %vm750, %v739, 0
      %v779 = vsel %vm750, %v740, 0
      %v782 = vsel %vm750, %v741, 0
      %v785 = vsel %vm750, %v742, 0
      %v788 = vsel %vm750, %v743, 0
      %v791 = vsel %vm750, %v744, 0
      %v794 = vsel %vm750, %v745, 0
      %v797 = vsel %vm750, %v746, 0
      %vm799 = vcmask 1043456
      %v801 = vsel %vm799, %v749, 0
      %803 = vmatpush.msra.mxu0 0.0
      %804 = vmatpush.msra.mxu0 0.0
      %805 = vmatpush.msra.mxu0 0.0
      %806 = vmatpush.msra.mxu0 0.0
      %807 = vmatpush.msra.mxu0 0.0
      %808 = vmatpush.msra.mxu0 0.0
      %809 = vmatpush.msra.mxu0 0.0
      %810 = vmatpush.msra.mxu0 0.0
      %811 = vmatpush.msra.mxu0 0.0
      %812 = vmatpush.msra.mxu0 0.0
      %813 = vmatpush.msra.mxu0 0.0
      %814 = vmatpush.msra.mxu0 0.0
      %815 = vmatpush.msra.mxu0 0.0
      %816 = vmatpush.msra.mxu0 0.0
      %817 = vmatpush.msra.mxu0 %v801
      %818 = vmatpush.msra.mxu0 %v748
      %819 = vmatmul.f32.gmra.mxu0 %v752
      %v820 = vpop.f32.mrf.mxu0
      %v821 = vadd.f32 0.0, %v820
      %822 = vmatmul.f32.gmra.mxu0 %v755
      %v823 = vpop.f32.mrf.mxu0
      %v824 = vadd.f32 0.0, %v823
      %825 = vmatmul.f32.gmra.mxu0 %v758
      %v826 = vpop.f32.mrf.mxu0
      %v827 = vadd.f32 0.0, %v826
      %828 = vmatmul.f32.gmra.mxu0 %v761
      %v829 = vpop.f32.mrf.mxu0
      %v830 = vadd.f32 0.0, %v829
      %831 = vmatmul.f32.gmra.mxu0 %v764
      %v832 = vpop.f32.mrf.mxu0
      %v833 = vadd.f32 0.0, %v832
      %834 = vmatmul.f32.gmra.mxu0 %v767
      %v835 = vpop.f32.mrf.mxu0
      %v836 = vadd.f32 0.0, %v835
      %837 = vmatmul.f32.gmra.mxu0 %v770
      %v838 = vpop.f32.mrf.mxu0
      %v839 = vadd.f32 0.0, %v838
      %840 = vmatmul.f32.gmra.mxu0 %v773
      %v841 = vpop.f32.mrf.mxu0
      %v842 = vadd.f32 0.0, %v841
      %843 = vmatmul.f32.gmra.mxu0 %v776
      %v844 = vpop.f32.mrf.mxu0
      %v845 = vadd.f32 0.0, %v844
      %846 = vmatmul.f32.gmra.mxu0 %v779
      %v847 = vpop.f32.mrf.mxu0
      %v848 = vadd.f32 0.0, %v847
      %849 = vmatmul.f32.gmra.mxu0 %v782
      %v850 = vpop.f32.mrf.mxu0
      %v851 = vadd.f32 0.0, %v850
      %852 = vmatmul.f32.gmra.mxu0 %v785
      %v853 = vpop.f32.mrf.mxu0
      %v854 = vadd.f32 0.0, %v853
      %855 = vmatmul.f32.gmra.mxu0 %v788
      %v856 = vpop.f32.mrf.mxu0
      %v857 = vadd.f32 0.0, %v856
      %858 = vmatmul.f32.gmra.mxu0 %v791
      %v859 = vpop.f32.mrf.mxu0
      %v860 = vadd.f32 0.0, %v859
      %861 = vmatmul.f32.gmra.mxu0 %v794
      %v862 = vpop.f32.mrf.mxu0
      %v863 = vadd.f32 0.0, %v862
      %864 = vmatmul.f32.gmra.mxu0 %v797
      %v865 = vpop.f32.mrf.mxu0
      %v866 = vadd.f32 0.0, %v865
      %867 = vdwg.mxu0
      %v869 = vsel %vm750, %v710, 0
      %v872 = vsel %vm750, %v711, 0
      %v875 = vsel %vm750, %v712, 0
      %v878 = vsel %vm750, %v713, 0
      %v881 = vsel %vm750, %v714, 0
      %v884 = vsel %vm750, %v715, 0
      %v887 = vsel %vm750, %v716, 0
      %v890 = vsel %vm750, %v717, 0
      %v893 = vsel %vm750, %v718, 0
      %v896 = vsel %vm750, %v719, 0
      %v899 = vsel %vm750, %v720, 0
      %v902 = vsel %vm750, %v721, 0
      %v905 = vsel %vm750, %v722, 0
      %v908 = vsel %vm750, %v723, 0
      %v911 = vsel %vm750, %v724, 0
      %v914 = vsel %vm750, %v725, 0
      %v917 = vsel %vm799, %v727, 0
      %919 = vmatpush.msra.mxu0 0.0
      %920 = vmatpush.msra.mxu0 0.0
      %921 = vmatpush.msra.mxu0 0.0
      %922 = vmatpush.msra.mxu0 0.0
      %923 = vmatpush.msra.mxu0 0.0
      %924 = vmatpush.msra.mxu0 0.0
      %925 = vmatpush.msra.mxu0 0.0
      %926 = vmatpush.msra.mxu0 0.0
      %927 = vmatpush.msra.mxu0 0.0
      %928 = vmatpush.msra.mxu0 0.0
      %929 = vmatpush.msra.mxu0 0.0
      %930 = vmatpush.msra.mxu0 0.0
      %931 = vmatpush.msra.mxu0 0.0
      %932 = vmatpush.msra.mxu0 0.0
      %933 = vmatpush.msra.mxu0 %v917
      %934 = vmatpush.msra.mxu0 %v726
      %935 = vmatmul.f32.gmra.mxu0 %v869
      %v936 = vpop.f32.mrf.mxu0
      %v937 = vadd.f32 %v821, %v936
      %938 = vmatmul.f32.gmra.mxu0 %v872
      %v939 = vpop.f32.mrf.mxu0
      %v940 = vadd.f32 %v824, %v939
      %941 = vmatmul.f32.gmra.mxu0 %v875
      %v942 = vpop.f32.mrf.mxu0
      %v943 = vadd.f32 %v827, %v942
      %944 = vmatmul.f32.gmra.mxu0 %v878
      %v945 = vpop.f32.mrf.mxu0
      %v946 = vadd.f32 %v830, %v945
      %947 = vmatmul.f32.gmra.mxu0 %v881
      %v948 = vpop.f32.mrf.mxu0
      %v949 = vadd.f32 %v833, %v948
      %950 = vmatmul.f32.gmra.mxu0 %v884
      %v951 = vpop.f32.mrf.mxu0
      %v952 = vadd.f32 %v836, %v951
      %953 = vmatmul.f32.gmra.mxu0 %v887
      %v954 = vpop.f32.mrf.mxu0
      %v955 = vadd.f32 %v839, %v954
      %956 = vmatmul.f32.gmra.mxu0 %v890
      %v957 = vpop.f32.mrf.mxu0
      %v958 = vadd.f32 %v842, %v957
      %959 = vmatmul.f32.gmra.mxu0 %v893
      %v960 = vpop.f32.mrf.mxu0
      %v961 = vadd.f32 %v845, %v960
      %962 = vmatmul.f32.gmra.mxu0 %v896
      %v963 = vpop.f32.mrf.mxu0
      %v964 = vadd.f32 %v848, %v963
      %965 = vmatmul.f32.gmra.mxu0 %v899
      %v966 = vpop.f32.mrf.mxu0
      %v967 = vadd.f32 %v851, %v966
      %968 = vmatmul.f32.gmra.mxu0 %v902
      %v969 = vpop.f32.mrf.mxu0
      %v970 = vadd.f32 %v854, %v969
      %971 = vmatmul.f32.gmra.mxu0 %v905
      %v972 = vpop.f32.mrf.mxu0
      %v973 = vadd.f32 %v857, %v972
      %974 = vmatmul.f32.gmra.mxu0 %v908
      %v975 = vpop.f32.mrf.mxu0
      %v976 = vadd.f32 %v860, %v975
      %977 = vmatmul.f32.gmra.mxu0 %v911
      %v978 = vpop.f32.mrf.mxu0
      %v979 = vadd.f32 %v863, %v978
      %980 = vmatmul.f32.gmra.mxu0 %v914
      %v981 = vpop.f32.mrf.mxu0
      %v982 = vadd.f32 %v866, %v981
      %983 = vdwg.mxu0
      %s984 = sadd.s32 %s707, 2
      %s985 = smul.u32 %s984, 16
      %s986 = scalar_lea.vmem [#allocation2], %s985
      %v987 = vld [vmem:[%s986] sm:$0xff]
      %v988 = vld [vmem:[%s986 + $0x8] sm:$0xff]
      %v989 = vld [vmem:[%s986 + $0x10] sm:$0xff]
      %v990 = vld [vmem:[%s986 + $0x18] sm:$0xff]
      %v991 = vld [vmem:[%s986 + $0x20] sm:$0xff]
      %v992 = vld [vmem:[%s986 + $0x28] sm:$0xff]
      %v993 = vld [vmem:[%s986 + $0x30] sm:$0xff]
      %v994 = vld [vmem:[%s986 + $0x38] sm:$0xff]
      %v995 = vld [vmem:[%s986 + $0x40] sm:$0xff]
      %v996 = vld [vmem:[%s986 + $0x48] sm:$0xff]
      %v997 = vld [vmem:[%s986 + $0x50] sm:$0xff]
      %v998 = vld [vmem:[%s986 + $0x58] sm:$0xff]
      %v999 = vld [vmem:[%s986 + $0x60] sm:$0xff]
      %v1000 = vld [vmem:[%s986 + $0x68] sm:$0xff]
      %v1001 = vld [vmem:[%s986 + $0x70] sm:$0xff]
      %v1002 = vld [vmem:[%s986 + $0x78] sm:$0xff]
      %s1003 = scalar_lea.vmem %s1, 32
      %v1004 = vld [vmem:[%s1003] sm:$0xff]
      %v1005 = vld [vmem:[%s1003 + $0x8] sm:$0xf]
      %v1007 = vsel %vm750, %v987, 0
      %v1010 = vsel %vm750, %v988, 0
      %v1013 = vsel %vm750, %v989, 0
      %v1016 = vsel %vm750, %v990, 0
      %v1019 = vsel %vm750, %v991, 0
      %v1022 = vsel %vm750, %v992, 0
      %v1025 = vsel %vm750, %v993, 0
      %v1028 = vsel %vm750, %v994, 0
      %v1031 = vsel %vm750, %v995, 0
      %v1034 = vsel %vm750, %v996, 0
      %v1037 = vsel %vm750, %v997, 0
      %v1040 = vsel %vm750, %v998, 0
      %v1043 = vsel %vm750, %v999, 0
      %v1046 = vsel %vm750, %v1000, 0
      %v1049 = vsel %vm750, %v1001, 0
      %v1052 = vsel %vm750, %v1002, 0
      %v1055 = vsel %vm799, %v1005, 0
      %1057 = vmatpush.msra.mxu0 0.0
      %1058 = vmatpush.msra.mxu0 0.0
      %1059 = vmatpush.msra.mxu0 0.0
      %1060 = vmatpush.msra.mxu0 0.0
      %1061 = vmatpush.msra.mxu0 0.0
      %1062 = vmatpush.msra.mxu0 0.0
      %1063 = vmatpush.msra.mxu0 0.0
      %1064 = vmatpush.msra.mxu0 0.0
      %1065 = vmatpush.msra.mxu0 0.0
      %1066 = vmatpush.msra.mxu0 0.0
      %1067 = vmatpush.msra.mxu0 0.0
      %1068 = vmatpush.msra.mxu0 0.0
      %1069 = vmatpush.msra.mxu0 0.0
      %1070 = vmatpush.msra.mxu0 0.0
      %1071 = vmatpush.msra.mxu0 %v1055
      %1072 = vmatpush.msra.mxu0 %v1004
      %1073 = vmatmul.f32.gmra.mxu0 %v1007
      %v1074 = vpop.f32.mrf.mxu0
      %v1075 = vadd.f32 0.0, %v1074
      %1076 = vmatmul.f32.gmra.mxu0 %v1010
      %v1077 = vpop.f32.mrf.mxu0
      %v1078 = vadd.f32 0.0, %v1077
      %1079 = vmatmul.f32.gmra.mxu0 %v1013
      %v1080 = vpop.f32.mrf.mxu0
      %v1081 = vadd.f32 0.0, %v1080
      %1082 = vmatmul.f32.gmra.mxu0 %v1016
      %v1083 = vpop.f32.mrf.mxu0
      %v1084 = vadd.f32 0.0, %v1083
      %1085 = vmatmul.f32.gmra.mxu0 %v1019
      %v1086 = vpop.f32.mrf.mxu0
      %v1087 = vadd.f32 0.0, %v1086
      %1088 = vmatmul.f32.gmra.mxu0 %v1022
      %v1089 = vpop.f32.mrf.mxu0
      %v1090 = vadd.f32 0.0, %v1089
      %1091 = vmatmul.f32.gmra.mxu0 %v1025
      %v1092 = vpop.f32.mrf.mxu0
      %v1093 = vadd.f32 0.0, %v1092
      %1094 = vmatmul.f32.gmra.mxu0 %v1028
      %v1095 = vpop.f32.mrf.mxu0
      %v1096 = vadd.f32 0.0, %v1095
      %1097 = vmatmul.f32.gmra.mxu0 %v1031
      %v1098 = vpop.f32.mrf.mxu0
      %v1099 = vadd.f32 0.0, %v1098
      %1100 = vmatmul.f32.gmra.mxu0 %v1034
      %v1101 = vpop.f32.mrf.mxu0
      %v1102 = vadd.f32 0.0, %v1101
      %1103 = vmatmul.f32.gmra.mxu0 %v1037
      %v1104 = vpop.f32.mrf.mxu0
      %v1105 = vadd.f32 0.0, %v1104
      %1106 = vmatmul.f32.gmra.mxu0 %v1040
      %v1107 = vpop.f32.mrf.mxu0
      %v1108 = vadd.f32 0.0, %v1107
      %1109 = vmatmul.f32.gmra.mxu0 %v1043
      %v1110 = vpop.f32.mrf.mxu0
      %v1111 = vadd.f32 0.0, %v1110
      %1112 = vmatmul.f32.gmra.mxu0 %v1046
      %v1113 = vpop.f32.mrf.mxu0
      %v1114 = vadd.f32 0.0, %v1113
      %1115 = vmatmul.f32.gmra.mxu0 %v1049
      %v1116 = vpop.f32.mrf.mxu0
      %v1117 = vadd.f32 0.0, %v1116
      %1118 = vmatmul.f32.gmra.mxu0 %v1052
      %v1119 = vpop.f32.mrf.mxu0
      %v1120 = vadd.f32 0.0, %v1119
      %1121 = vdwg.mxu0
      %v1122 = vadd.f32 %v937, %v1075
      %v1123 = vadd.f32 %v940, %v1078
      %v1124 = vadd.f32 %v943, %v1081
      %v1125 = vadd.f32 %v946, %v1084
      %v1126 = vadd.f32 %v949, %v1087
      %v1127 = vadd.f32 %v952, %v1090
      %v1128 = vadd.f32 %v955, %v1093
      %v1129 = vadd.f32 %v958, %v1096
      %v1130 = vadd.f32 %v961, %v1099
      %v1131 = vadd.f32 %v964, %v1102
      %v1132 = vadd.f32 %v967, %v1105
      %v1133 = vadd.f32 %v970, %v1108
      %v1134 = vadd.f32 %v973, %v1111
      %v1135 = vadd.f32 %v976, %v1114
      %v1136 = vadd.f32 %v979, %v1117
      %v1137 = vadd.f32 %v982, %v1120
      %v1138 = vld [vmem:[%s2] sm:$0x1]
      %v1140 = vperm.slane %v1138, 0
      %v1142 = vadd.f32 %v1122, %v1140
      %v1143 = vadd.f32 %v1123, %v1140
      %v1144 = vadd.f32 %v1124, %v1140
      %v1145 = vadd.f32 %v1125, %v1140
      %v1146 = vadd.f32 %v1126, %v1140
      %v1147 = vadd.f32 %v1127, %v1140
      %v1148 = vadd.f32 %v1128, %v1140
      %v1149 = vadd.f32 %v1129, %v1140
      %v1150 = vadd.f32 %v1130, %v1140
      %v1151 = vadd.f32 %v1131, %v1140
      %v1152 = vadd.f32 %v1132, %v1140
      %v1153 = vadd.f32 %v1133, %v1140
      %v1154 = vadd.f32 %v1134, %v1140
      %v1155 = vadd.f32 %v1135, %v1140
      %v1156 = vadd.f32 %v1136, %v1140
      %v1157 = vadd.f32 %v1137, %v1140
      %v1158 = vmax.f32 %v1142, 0.0
      %v1159 = vmax.f32 %v1143, 0.0
      %v1160 = vmax.f32 %v1144, 0.0
      %v1161 = vmax.f32 %v1145, 0.0
      %v1162 = vmax.f32 %v1146, 0.0
      %v1163 = vmax.f32 %v1147, 0.0
      %v1164 = vmax.f32 %v1148, 0.0
      %v1165 = vmax.f32 %v1149, 0.0
      %v1166 = vmax.f32 %v1150, 0.0
      %v1167 = vmax.f32 %v1151, 0.0
      %v1168 = vmax.f32 %v1152, 0.0
      %v1169 = vmax.f32 %v1153, 0.0
      %v1170 = vmax.f32 %v1154, 0.0
      %v1171 = vmax.f32 %v1155, 0.0
      %v1172 = vmax.f32 %v1156, 0.0
      %v1173 = vmax.f32 %v1157, 0.0
      %vm1174 = vcmask 64512
      %1175 = vst.msk [vmem:[%s194] sm:$0xff] %vm1174, %v1158
      %1176 = vst.msk [vmem:[%s194 + $0x8] sm:$0xff] %vm1174, %v1159
      %1177 = vst.msk [vmem:[%s194 + $0x10] sm:$0xff] %vm1174, %v1160
      %1178 = vst.msk [vmem:[%s194 + $0x18] sm:$0xff] %vm1174, %v1161
      %1179 = vst.msk [vmem:[%s194 + $0x20] sm:$0xff] %vm1174, %v1162
      %1180 = vst.msk [vmem:[%s194 + $0x28] sm:$0xff] %vm1174, %v1163
      %1181 = vst.msk [vmem:[%s194 + $0x30] sm:$0xff] %vm1174, %v1164
      %1182 = vst.msk [vmem:[%s194 + $0x38] sm:$0xff] %vm1174, %v1165
      %1183 = vst.msk [vmem:[%s194 + $0x40] sm:$0xff] %vm1174, %v1166
      %1184 = vst.msk [vmem:[%s194 + $0x48] sm:$0xff] %vm1174, %v1167
      %1185 = vst.msk [vmem:[%s194 + $0x50] sm:$0xff] %vm1174, %v1168
      %1186 = vst.msk [vmem:[%s194 + $0x58] sm:$0xff] %vm1174, %v1169
      %1187 = vst.msk [vmem:[%s194 + $0x60] sm:$0xff] %vm1174, %v1170
      %1188 = vst.msk [vmem:[%s194 + $0x68] sm:$0xff] %vm1174, %v1171
      %1189 = vst.msk [vmem:[%s194 + $0x70] sm:$0xff] %vm1174, %v1172
      %1190 = vst.msk [vmem:[%s194 + $0x78] sm:$0xff] %vm1174, %v1173
      %s1191 = smul.u32 8, %s19
      %p1192 = scmp.lt.s32.totalorder %s18, 1
      %s1193 = scalar_select %p1192, %s18, 1
      %p1194 = scmp.lt.s32.totalorder %s1191, 15
      %s1195 = scalar_select %p1194, %s1191, 15
      %s1196 = smul.addr %s1195, 2
      %s1197 = smul.addr %s1193, 32
      %s1198 = sadd.s32 %s1196, %s1197
      %s1199 = smul.addr %s1198, 8
      %s1200 = scalar_lea.vmem %s3, %s1199
      // Predicated region
      $region37: #{inception_forward.5} parent=31 // pred_check
        %p1201 = pneg %p114
      $region38: #{inception_forward.5} parent=31 // pred_check_branch
        %1203 = sbr.rel (%p1201) target = $region40
      $region39: #{inception_forward.5} parent=31 // pred_region
        %s1204 = smul.u32 8, %s19
      $region40: #{inception_forward.5} parent=31 // pred_fallthru
        _
    $region32: #{inception_forward.5} parent=5 // pred_fallthru
      _
    %p1205 = scmp.le.s32.totalorder 2, %s9
    // Predicated region
    $region41: #{inception_forward.5} parent=5 // pred_check
      %p1206 = pneg %p1205
    $region42: #{inception_forward.5} parent=5 // pred_check_branch
      %1208 = sbr.rel (%p1206) target = $region44
    $region43: #{inception_forward.5} parent=5 // pred_region
      %s1209 = ssub.s32 %s9, 2
      // Predicated region
      $region45: #{inception_forward.5} parent=43 // pred_check
        %p1210 = pneg %p120
      $region46: #{inception_forward.5} parent=43 // pred_check_branch
        %1212 = sbr.rel (%p1210) target = $region48
      $region47: #{inception_forward.5} parent=43 // pred_region
        %s1213 = smul.u32 8, %s21
        %p1214 = scmp.lt.s32.totalorder %s20, 1
        %s1215 = scalar_select %p1214, %s20, 1
        %p1216 = scmp.lt.s32.totalorder %s1213, 15
        %s1217 = scalar_select %p1216, %s1213, 15
        %s1218 = smul.addr %s1217, 2
        %s1219 = smul.addr %s1215, 32
        %s1220 = sadd.s32 %s1218, %s1219
        %s1221 = smul.addr %s1220, 8
        %s1222 = scalar_lea.vmem %s3, %s1221
      $region48: #{inception_forward.5} parent=43 // pred_fallthru
        _
    $region44: #{inception_forward.5} parent=5 // pred_fallthru
      _
  $region6: #{inception_forward.5} parent=0 // loop_footer
    %s13 = sadd.s32 1, %s9
  $region7: #{inception_forward.5} parent=0 // loop_footer_branch
    %8 = sbr.rel target = $region3
  $region8: #{inception_forward.5} parent=0 // loop_exit
    _

// kernel: inception_forward.7
$region0: #{inception_forward.7}
  #allocation0 [shape = 'u32[]', space=smem, size = 0x4, offset = 0x4, fixed_abs, tag = 'smem constant byte address 0x4 - core index']
  #allocation1 [shape = 'u32[72,128]{1,0:T(1,128)}', space=vmem, size = 0x9000, scoped, tag = 'internal scratch']
  #allocation2 [shape = 'f32[18,16,4]{2,1,0:T(8,128)}', space=vmem, size = 0x24000, scoped, tag = 'scratch operand']
  %s0 = inlined_call_operand.vmem [shape: f32[2,18,18,4], index: 0, kind: input, shape index: {}]
  %s1 = inlined_call_operand.vmem [shape: f32[4,8], index: 1, kind: input, shape index: {}]
  %s2 = inlined_call_operand.vmem [shape: f32[1,8], index: 2, kind: input, shape index: {}]
  %s3 = inlined_call_operand.vmem [shape: f32[2,16,16,8], index: 3, kind: output, shape index: {}]
  %s4 = sld [smem:[#allocation0]]
  $region49: #{inception_forward.7} parent=0
    _
  %s6 = ssub.s32 1, %s4
  %s7 = scalar_select 0, %s6, %s4
  loop: start=0, step=1, limit=6
  $region2: #{inception_forward.7} parent=0 // loop_pre_header
    _
  $region3: #{inception_forward.7} parent=0 // loop_header
    %s9 = sphi 0, %s13
    %p10 = scmp.ge.s32.totalorder %s9, 6
    %s16 = sphi 0, %s28
    %s17 = sphi 0, %s24
    %s18 = sphi 0, %s16
    %s19 = sphi 0, %s17
    %s20 = sphi 0, %s18
    %s21 = sphi 0, %s19
    %s31 = sphi 0, %s33
    %s34 = sphi 0, %s31
    %s35 = sphi 0, %s34
    %s51 = sphi 0, %s35
    %s55 = sphi 0, %s55
    %s57 = sphi 0, %s55
    %s58 = sphi 0, %s57
    %s72 = sphi 0, %s58
    %s76 = sphi 0, %s76
    %s78 = sphi 0, %s76
    %s79 = sphi 0, %s78
    %s93 = sphi 0, %s79
    %s101 = sphi 0, %s103
    %s104 = sphi 0, %s101
    %s105 = sphi 0, %s104
    %s121 = sphi 0, %s105
  $region4: #{inception_forward.7} parent=0 // loop_header_branch
    %12 = sbr.rel (%p10) target = $region8
  $region5: #{inception_forward.7} parent=0 // loop_body
    %s14 = ssub.s32 %s9, 1
    %s15 = ssub.s32 %s9, 2
    %s22 = sadd.s32 1, %s17
    %p23 = scmp.ge.s32.totalorder %s22, 2
    %s24 = scalar_select %p23, 0, %s22
    %s25 = sadd.s32 1, %s16
    %s26 = scalar_select %p23, %s25, %s16
    %p27 = scmp.ge.s32.totalorder %s26, 2
    %s28 = scalar_select %p27, 0, %s26
    %s29 = ssub.s32 %s16, %s28
    %p30 = scmp.eq.s32.totalorder %s29, 0
    %s32 = sadd.s32 %s31, 1
    %s33 = scalar_select %p30, %s31, %s32
    %p36 = pneg %p30
    %p37 = scmp.eq.s32.totalorder %s9, 3
    %p38 = por %p36, %p37
    %p39 = scmp.ne.s32.totalorder %s31, %s34
    %p40 = scmp.eq.s32.totalorder %s9, 0
    %p41 = por %p39, %p40
    %p42 = scmp.ne.s32.totalorder %s31, %s34
    %p43 = scmp.eq.s32.totalorder %s14, 3
    %p44 = por %p42, %p43
    %p45 = scmp.ne.s32.totalorder %s34, %s35
    %p46 = scmp.eq.s32.totalorder %s14, 0
    %p47 = por %p45, %p46
    %p48 = scmp.ne.s32.totalorder %s34, %s35
    %p49 = scmp.eq.s32.totalorder %s15, 3
    %p50 = por %p48, %p49
    %p52 = scmp.ne.s32.totalorder %s35, %s51
    %p53 = scmp.eq.s32.totalorder %s15, 0
    %p54 = por %p52, %p53
    %s56 = sadd.s32 %s55, 1
    %p59 = scmp.eq.s32.totalorder %s9, 3
    %p60 = scmp.ne.s32.totalorder %s55, %s57
    %p61 = scmp.eq.s32.totalorder %s9, 0
    %p62 = por %p60, %p61
    %p63 = scmp.ne.s32.totalorder %s55, %s57
    %p64 = scmp.eq.s32.totalorder %s14, 3
    %p65 = por %p63, %p64
    %p66 = scmp.ne.s32.totalorder %s57, %s58
    %p67 = scmp.eq.s32.totalorder %s14, 0
    %p68 = por %p66, %p67
    %p69 = scmp.ne.s32.totalorder %s57, %s58
    %p70 = scmp.eq.s32.totalorder %s15, 3
    %p71 = por %p69, %p70
    %p73 = scmp.ne.s32.totalorder %s58, %s72
    %p74 = scmp.eq.s32.totalorder %s15, 0
    %p75 = por %p73, %p74
    %s77 = sadd.s32 %s76, 1
    %p80 = scmp.eq.s32.totalorder %s9, 3
    %p81 = scmp.ne.s32.totalorder %s76, %s78
    %p82 = scmp.eq.s32.totalorder %s9, 0
    %p83 = por %p81, %p82
    %p84 = scmp.ne.s32.totalorder %s76, %s78
    %p85 = scmp.eq.s32.totalorder %s14, 3
    %p86 = por %p84, %p85
    %p87 = scmp.ne.s32.totalorder %s78, %s79
    %p88 = scmp.eq.s32.totalorder %s14, 0
    %p89 = por %p87, %p88
    %p90 = scmp.ne.s32.totalorder %s78, %s79
    %p91 = scmp.eq.s32.totalorder %s15, 3
    %p92 = por %p90, %p91
    %p94 = scmp.ne.s32.totalorder %s79, %s93
    %p95 = scmp.eq.s32.totalorder %s15, 0
    %p96 = por %p94, %p95
    %s97 = ssub.s32 %s16, %s28
    %s98 = ssub.s32 %s17, %s24
    %s99 = sor.u32 %s97, %s98
    %p100 = scmp.eq.s32.totalorder %s99, 0
    %s102 = sadd.s32 %s101, 1
    %s103 = scalar_select %p100, %s101, %s102
    %p106 = pneg %p100
    %p107 = scmp.eq.s32.totalorder %s9, 3
    %p108 = por %p106, %p107
    %p109 = scmp.ne.s32.totalorder %s101, %s104
    %p110 = scmp.eq.s32.totalorder %s9, 0
    %p111 = por %p109, %p110
    %p112 = scmp.ne.s32.totalorder %s101, %s104
    %p113 = scmp.eq.s32.totalorder %s14, 3
    %p114 = por %p112, %p113
    %p115 = scmp.ne.s32.totalorder %s104, %s105
    %p116 = scmp.eq.s32.totalorder %s14, 0
    %p117 = por %p115, %p116
    %p118 = scmp.ne.s32.totalorder %s104, %s105
    %p119 = scmp.eq.s32.totalorder %s15, 3
    %p120 = por %p118, %p119
    %p122 = scmp.ne.s32.totalorder %s105, %s121
    %p123 = scmp.eq.s32.totalorder %s15, 0
    %p124 = por %p122, %p123
    %p125 = scmp.le.s32.totalorder 1, %s9
    %p126 = scmp.lt.s32.totalorder %s9, 5
    %p127 = pnand %p125, %p126
    %p128 = pneg %p127
    // Predicated region
    $region9: #{inception_forward.7} parent=5 // pred_check
      _
    $region10: #{inception_forward.7} parent=5 // pred_check_branch
      %130 = sbr.rel (%p127) target = $region12
    $region11: #{inception_forward.7} parent=5 // pred_region
      %s131 = ssub.s32 %s9, 1
      // Predicated region
      $region13: #{inception_forward.7} parent=11 // pred_check
        %p132 = pneg %p68
      $region14: #{inception_forward.7} parent=11 // pred_check_branch
        %134 = sbr.rel (%p132) target = $region16
      $region15: #{inception_forward.7} parent=11 // pred_region
        _
      $region16: #{inception_forward.7} parent=11 // pred_fallthru
        _
      // Predicated region
      $region17: #{inception_forward.7} parent=11 // pred_check
        %p135 = pneg %p89
      $region18: #{inception_forward.7} parent=11 // pred_check_branch
        %137 = sbr.rel (%p135) target = $region20
      $region19: #{inception_forward.7} parent=11 // pred_region
        _
      $region20: #{inception_forward.7} parent=11 // pred_fallthru
        _
    $region12: #{inception_forward.7} parent=5 // pred_fallthru
      _
    %p138 = scmp.lt.s32.totalorder %s9, 4
    // Predicated region
    $region21: #{inception_forward.7} parent=5 // pred_check
      %p139 = pneg %p138
    $region22: #{inception_forward.7} parent=5 // pred_check_branch
      %141 = sbr.rel (%p139) target = $region24
    $region23: #{inception_forward.7} parent=5 // pred_region
      // Predicated region
      $region25: #{inception_forward.7} parent=23 // pred_check
        %p142 = pneg %p41
      $region26: #{inception_forward.7} parent=23 // pred_check_branch
        %144 = sbr.rel (%p142) target = $region28
      $region27: #{inception_forward.7} parent=23 // pred_region
        %p145 = scmp.lt.s32.totalorder %s16, 1
        %s146 = scalar_select %p145, %s16, 1
        %s147 = smul.addr %s146, 54
        %s148 = smul.addr %s147, 8
        %s149 = scalar_lea.vmem %s0, %s148
      $region28: #{inception_forward.7} parent=23 // pred_fallthru
        _
    $region24: #{inception_forward.7} parent=5 // pred_fallthru
      _
    %p150 = scmp.le.s32.totalorder 1, %s9
    %p151 = scmp.lt.s32.totalorder %s9, 5
    %p152 = pnand %p150, %p151
    %p153 = pneg %p152
    // Predicated region
    $region29: #{inception_forward.7} parent=5 // pred_check
      _
    $region30: #{inception_forward.7} parent=5 // pred_check_branch
      %155 = sbr.rel (%p152) target = $region32
    $region31: #{inception_forward.7} parent=5 // pred_region
      %s156 = ssub.s32 %s9, 1
      %p157 = scmp.lt.s32.totalorder %s18, 1
      %s158 = scalar_select %p157, %s18, 1
      %s159 = smul.addr %s158, 54
      %s160 = smul.addr %s159, 8
      %s161 = scalar_lea.vmem %s0, %s160
      %p162 = pneg %p47
      %p163 = pneg %p44
      %p164 = pneg %p68
      %p165 = pneg %p65
      %p166 = pneg %p89
      %p167 = pneg %p86
      %p168 = pneg %p117
      %p169 = pneg %p114
      %s170 = smul.u32 8, %s19
      %p171 = scmp.lt.s32.totalorder %s18, 1
      %s172 = scalar_select %p171, %s18, 1
      %p173 = scmp.lt.s32.totalorder %s170, 15
      %s174 = scalar_select %p173, %s170, 15
      %s175 = smul.addr %s174, 2
      %s176 = smul.addr %s172, 32
      %s177 = sadd.s32 %s175, %s176
      %s178 = smul.addr %s177, 8
      %s179 = scalar_lea.vmem %s3, %s178
      %p180 = scmp.lt.s32.totalorder %s18, 1
      %s181 = scalar_select %p180, %s18, 1
      %s182 = smul.addr %s181, 54
      %s183 = smul.addr %s182, 8
      %s184 = scalar_lea.vmem %s0, %s183
      %s185 = smul.u32 8, %s19
      %p186 = scmp.lt.s32.totalorder %s18, 1
      %s187 = scalar_select %p186, %s18, 1
      %p188 = scmp.lt.s32.totalorder %s185, 15
      %s189 = scalar_select %p188, %s185, 15
      %s190 = smul.addr %s189, 2
      %s191 = smul.addr %s187, 32
      %s192 = sadd.s32 %s190, %s191
      %s193 = smul.addr %s192, 8
      %s194 = scalar_lea.vmem %s3, %s193
      %s195 = smul.u32 8, %s19
      %p196 = scmp.eq.s32.totalorder %s19, 0
      // Predicated region
      $region33: #{inception_forward.7} parent=31 // pred_check
        %p197 = pneg %p196
      $region34: #{inception_forward.7} parent=31 // pred_check_branch
        %199 = sbr.rel (%p197) target = $region36
      $region35: #{inception_forward.7} parent=31 // pred_region
        %v200 = vld [vmem:[%s184] sm:$0xff]
        %v201 = vld [vmem:[%s184 + $0x8] sm:$0xff]
        %v202 = vld [vmem:[%s184 + $0x18] sm:$0xff]
        %v203 = vld [vmem:[%s184 + $0x20] sm:$0xff]
        %v204 = vld [vmem:[%s184 + $0x30] sm:$0xff]
        %v205 = vld [vmem:[%s184 + $0x38] sm:$0xff]
        %v206 = vld [vmem:[%s184 + $0x48] sm:$0xff]
        %v207 = vld [vmem:[%s184 + $0x50] sm:$0xff]
        %v208 = vld [vmem:[%s184 + $0x60] sm:$0xff]
        %v209 = vld [vmem:[%s184 + $0x68] sm:$0xff]
        %v210 = vld [vmem:[%s184 + $0x78] sm:$0xff]
        %v211 = vld [vmem:[%s184 + $0x80] sm:$0xff]
        %v212 = vld [vmem:[%s184 + $0x90] sm:$0xff]
        %v213 = vld [vmem:[%s184 + $0x98] sm:$0xff]
        %v214 = vld [vmem:[%s184 + $0xa8] sm:$0xff]
        %v215 = vld [vmem:[%s184 + $0xb0] sm:$0xff]
        %v216 = vld [vmem:[%s184 + $0xc0] sm:$0xff]
        %v217 = vld [vmem:[%s184 + $0xc8] sm:$0xff]
        %v218 = vld [vmem:[%s184 + $0xd8] sm:$0xff]
        %v219 = vld [vmem:[%s184 + $0xe0] sm:$0xff]
        %v220 = vld [vmem:[%s184 + $0xf0] sm:$0xff]
        %v221 = vld [vmem:[%s184 + $0xf8] sm:$0xff]
        %v222 = vld [vmem:[%s184 + $0x108] sm:$0xff]
        %v223 = vld [vmem:[%s184 + $0x110] sm:$0xff]
        %v224 = vld [vmem:[%s184 + $0x120] sm:$0xff]
        %v225 = vld [vmem:[%s184 + $0x128] sm:$0xff]
        %v226 = vld [vmem:[%s184 + $0x138] sm:$0xff]
        %v227 = vld [vmem:[%s184 + $0x140] sm:$0xff]
        %v228 = vld [vmem:[%s184 + $0x150] sm:$0xff]
        %v229 = vld [vmem:[%s184 + $0x158] sm:$0xff]
        %v230 = vld [vmem:[%s184 + $0x168] sm:$0xff]
        %v231 = vld [vmem:[%s184 + $0x170] sm:$0xff]
        %v232 = vld [vmem:[%s184 + $0x180] sm:$0xff]
        %v233 = vld [vmem:[%s184 + $0x188] sm:$0xff]
        %v234 = vld [vmem:[%s184 + $0x198] sm:$0xff]
        %v235 = vld [vmem:[%s184 + $0x1a0] sm:$0xff]
        %v236 = vld [vmem:[%s184 + $0x1] sm:$0xff]
        %v237 = vld [vmem:[%s184 + $0x9] sm:$0xff]
        %v238 = vld [vmem:[%s184 + $0x19] sm:$0xff]
        %v239 = vld [vmem:[%s184 + $0x21] sm:$0xff]
        %v240 = vld [vmem:[%s184 + $0x31] sm:$0xff]
        %v241 = vld [vmem:[%s184 + $0x39] sm:$0xff]
        %v242 = vld [vmem:[%s184 + $0x49] sm:$0xff]
        %v243 = vld [vmem:[%s184 + $0x51] sm:$0xff]
        %v244 = vld [vmem:[%s184 + $0x61] sm:$0xff]
        %v245 = vld [vmem:[%s184 + $0x69] sm:$0xff]
        %v246 = vld [vmem:[%s184 + $0x79] sm:$0xff]
        %v247 = vld [vmem:[%s184 + $0x81] sm:$0xff]
        %v248 = vld [vmem:[%s184 + $0x91] sm:$0xff]
        %v249 = vld [vmem:[%s184 + $0x99] sm:$0xff]
        %v250 = vld [vmem:[%s184 + $0xa9] sm:$0xff]
        %v251 = vld [vmem:[%s184 + $0xb1] sm:$0xff]
        %v252 = vld [vmem:[%s184 + $0xc1] sm:$0xff]
        %v253 = vld [vmem:[%s184 + $0xc9] sm:$0xff]
        %v254 = vld [vmem:[%s184 + $0xd9] sm:$0xff]
        %v255 = vld [vmem:[%s184 + $0xe1] sm:$0xff]
        %v256 = vld [vmem:[%s184 + $0xf1] sm:$0xff]
        %v257 = vld [vmem:[%s184 + $0xf9] sm:$0xff]
        %v258 = vld [vmem:[%s184 + $0x109] sm:$0xff]
        %v259 = vld [vmem:[%s184 + $0x111] sm:$0xff]
        %v260 = vld [vmem:[%s184 + $0x121] sm:$0xff]
        %v261 = vld [vmem:[%s184 + $0x129] sm:$0xff]
        %v262 = vld [vmem:[%s184 + $0x139] sm:$0xff]
        %v263 = vld [vmem:[%s184 + $0x141] sm:$0xff]
        %v264 = vld [vmem:[%s184 + $0x151] sm:$0xff]
        %v265 = vld [vmem:[%s184 + $0x159] sm:$0xff]
        %v266 = vld [vmem:[%s184 + $0x169] sm:$0xff]
        %v267 = vld [vmem:[%s184 + $0x171] sm:$0xff]
        %v268 = vld [vmem:[%s184 + $0x181] sm:$0xff]
        %v269 = vld [vmem:[%s184 + $0x189] sm:$0xff]
        %v270 = vld [vmem:[%s184 + $0x199] sm:$0xff]
        %v271 = vld [vmem:[%s184 + $0x1a1] sm:$0xff]
        %v272 = vmax.f32 %v200, %v236
        %v273 = vmax.f32 %v201, %v237
        %v274 = vmax.f32 %v202, %v238
        %v275 = vmax.f32 %v203, %v239
        %v276 = vmax.f32 %v204, %v240
        %v277 = vmax.f32 %v205, %v241
        %v278 = vmax.f32 %v206, %v242
        %v279 = vmax.f32 %v207, %v243
        %v280 = vmax.f32 %v208, %v244
        %v281 = vmax.f32 %v209, %v245
        %v282 = vmax.f32 %v210, %v246
        %v283 = vmax.f32 %v211, %v247
        %v284 = vmax.f32 %v212, %v248
        %v285 = vmax.f32 %v213, %v249
        %v286 = vmax.f32 %v214, %v250
        %v287 = vmax.f32 %v215, %v251
        %v288 = vmax.f32 %v216, %v252
        %v289 = vmax.f32 %v217, %v253
        %v290 = vmax.f32 %v218, %v254
        %v291 = vmax.f32 %v219, %v255
        %v292 = vmax.f32 %v220, %v256
        %v293 = vmax.f32 %v221, %v257
        %v294 = vmax.f32 %v222, %v258
        %v295 = vmax.f32 %v223, %v259
        %v296 = vmax.f32 %v224, %v260
        %v297 = vmax.f32 %v225, %v261
        %v298 = vmax.f32 %v226, %v262
        %v299 = vmax.f32 %v227, %v263
        %v300 = vmax.f32 %v228, %v264
        %v301 = vmax.f32 %v229, %v265
        %v302 = vmax.f32 %v230, %v266
        %v303 = vmax.f32 %v231, %v267
        %v304 = vmax.f32 %v232, %v268
        %v305 = vmax.f32 %v233, %v269
        %v306 = vmax.f32 %v234, %v270
        %v307 = vmax.f32 %v235, %v271
        %v308 = vld [vmem:[%s184 + $0x2] sm:$0xff]
        %v309 = vld [vmem:[%s184 + $0xa] sm:$0xff]
        %v310 = vld [vmem:[%s184 + $0x1a] sm:$0xff]
        %v311 = vld [vmem:[%s184 + $0x22] sm:$0xff]
        %v312 = vld [vmem:[%s184 + $0x32] sm:$0xff]
        %v313 = vld [vmem:[%s184 + $0x3a] sm:$0xff]
        %v314 = vld [vmem:[%s184 + $0x4a] sm:$0xff]
        %v315 = vld [vmem:[%s184 + $0x52] sm:$0xff]
        %v316 = vld [vmem:[%s184 + $0x62] sm:$0xff]
        %v317 = vld [vmem:[%s184 + $0x6a] sm:$0xff]
        %v318 = vld [vmem:[%s184 + $0x7a] sm:$0xff]
        %v319 = vld [vmem:[%s184 + $0x82] sm:$0xff]
        %v320 = vld [vmem:[%s184 + $0x92] sm:$0xff]
        %v321 = vld [vmem:[%s184 + $0x9a] sm:$0xff]
        %v322 = vld [vmem:[%s184 + $0xaa] sm:$0xff]
        %v323 = vld [vmem:[%s184 + $0xb2] sm:$0xff]
        %v324 = vld [vmem:[%s184 + $0xc2] sm:$0xff]
        %v325 = vld [vmem:[%s184 + $0xca] sm:$0xff]
        %v326 = vld [vmem:[%s184 + $0xda] sm:$0xff]
        %v327 = vld [vmem:[%s184 + $0xe2] sm:$0xff]
        %v328 = vld [vmem:[%s184 + $0xf2] sm:$0xff]
        %v329 = vld [vmem:[%s184 + $0xfa] sm:$0xff]
        %v330 = vld [vmem:[%s184 + $0x10a] sm:$0xff]
        %v331 = vld [vmem:[%s184 + $0x112] sm:$0xff]
        %v332 = vld [vmem:[%s184 + $0x122] sm:$0xff]
        %v333 = vld [vmem:[%s184 + $0x12a] sm:$0xff]
        %v334 = vld [vmem:[%s184 + $0x13a] sm:$0xff]
        %v335 = vld [vmem:[%s184 + $0x142] sm:$0xff]
        %v336 = vld [vmem:[%s184 + $0x152] sm:$0xff]
        %v337 = vld [vmem:[%s184 + $0x15a] sm:$0xff]
        %v338 = vld [vmem:[%s184 + $0x16a] sm:$0xff]
        %v339 = vld [vmem:[%s184 + $0x172] sm:$0xff]
        %v340 = vld [vmem:[%s184 + $0x182] sm:$0xff]
        %v341 = vld [vmem:[%s184 + $0x18a] sm:$0xff]
        %v342 = vld [vmem:[%s184 + $0x19a] sm:$0xff]
        %v343 = vld [vmem:[%s184 + $0x1a2] sm:$0xff]
        %v344 = vmax.f32 %v272, %v308
        %v345 = vmax.f32 %v273, %v309
        %v346 = vmax.f32 %v274, %v310
        %v347 = vmax.f32 %v275, %v311
        %v348 = vmax.f32 %v276, %v312
        %v349 = vmax.f32 %v277, %v313
        %v350 = vmax.f32 %v278, %v314
        %v351 = vmax.f32 %v279, %v315
        %v352 = vmax.f32 %v280, %v316
        %v353 = vmax.f32 %v281, %v317
        %v354 = vmax.f32 %v282, %v318
        %v355 = vmax.f32 %v283, %v319
        %v356 = vmax.f32 %v284, %v320
        %v357 = vmax.f32 %v285, %v321
        %v358 = vmax.f32 %v286, %v322
        %v359 = vmax.f32 %v287, %v323
        %v360 = vmax.f32 %v288, %v324
        %v361 = vmax.f32 %v289, %v325
        %v362 = vmax.f32 %v290, %v326
        %v363 = vmax.f32 %v291, %v327
        %v364 = vmax.f32 %v292, %v328
        %v365 = vmax.f32 %v293, %v329
        %v366 = vmax.f32 %v294, %v330
        %v367 = vmax.f32 %v295, %v331
        %v368 = vmax.f32 %v296, %v332
        %v369 = vmax.f32 %v297, %v333
        %v370 = vmax.f32 %v298, %v334
        %v371 = vmax.f32 %v299, %v335
        %v372 = vmax.f32 %v300, %v336
        %v373 = vmax.f32 %v301, %v337
        %v374 = vmax.f32 %v302, %v338
        %v375 = vmax.f32 %v303, %v339
        %v376 = vmax.f32 %v304, %v340
        %v377 = vmax.f32 %v305, %v341
        %v378 = vmax.f32 %v306, %v342
        %v379 = vmax.f32 %v307, %v343
        %vm380 = vcmask 31744
        %381 = vst.msk [vmem:[#allocation2] sm:$0xff] %vm380, %v344
        %382 = vst.msk [vmem:[#allocation2 + $0x8] sm:$0xff] %vm380, %v345
        %383 = vst.msk [vmem:[#allocation2 + $0x10] sm:$0xff] %vm380, %v346
        %384 = vst.msk [vmem:[#allocation2 + $0x18] sm:$0xff] %vm380, %v347
        %385 = vst.msk [vmem:[#allocation2 + $0x20] sm:$0xff] %vm380, %v348
        %386 = vst.msk [vmem:[#allocation2 + $0x28] sm:$0xff] %vm380, %v349
        %387 = vst.msk [vmem:[#allocation2 + $0x30] sm:$0xff] %vm380, %v350
        %388 = vst.msk [vmem:[#allocation2 + $0x38] sm:$0xff] %vm380, %v351
        %389 = vst.msk [vmem:[#allocation2 + $0x40] sm:$0xff] %vm380, %v352
        %390 = vst.msk [vmem:[#allocation2 + $0x48] sm:$0xff] %vm380, %v353
        %391 = vst.msk [vmem:[#allocation2 + $0x50] sm:$0xff] %vm380, %v354
        %392 = vst.msk [vmem:[#allocation2 + $0x58] sm:$0xff] %vm380, %v355
        %393 = vst.msk [vmem:[#allocation2 + $0x60] sm:$0xff] %vm380, %v356
        %394 = vst.msk [vmem:[#allocation2 + $0x68] sm:$0xff] %vm380, %v357
        %395 = vst.msk [vmem:[#allocation2 + $0x70] sm:$0xff] %vm380, %v358
        %396 = vst.msk [vmem:[#allocation2 + $0x78] sm:$0xff] %vm380, %v359
        %397 = vst.msk [vmem:[#allocation2 + $0x80] sm:$0xff] %vm380, %v360
        %398 = vst.msk [vmem:[#allocation2 + $0x88] sm:$0xff] %vm380, %v361
        %399 = vst.msk [vmem:[#allocation2 + $0x90] sm:$0xff] %vm380, %v362
        %400 = vst.msk [vmem:[#allocation2 + $0x98] sm:$0xff] %vm380, %v363
        %401 = vst.msk [vmem:[#allocation2 + $0xa0] sm:$0xff] %vm380, %v364
        %402 = vst.msk [vmem:[#allocation2 + $0xa8] sm:$0xff] %vm380, %v365
        %403 = vst.msk [vmem:[#allocation2 + $0xb0] sm:$0xff] %vm380, %v366
        %404 = vst.msk [vmem:[#allocation2 + $0xb8] sm:$0xff] %vm380, %v367
        %405 = vst.msk [vmem:[#allocation2 + $0xc0] sm:$0xff] %vm380, %v368
        %406 = vst.msk [vmem:[#allocation2 + $0xc8] sm:$0xff] %vm380, %v369
        %407 = vst.msk [vmem:[#allocation2 + $0xd0] sm:$0xff] %vm380, %v370
        %408 = vst.msk [vmem:[#allocation2 + $0xd8] sm:$0xff] %vm380, %v371
        %409 = vst.msk [vmem:[#allocation2 + $0xe0] sm:$0xff] %vm380, %v372
        %410 = vst.msk [vmem:[#allocation2 + $0xe8] sm:$0xff] %vm380, %v373
        %411 = vst.msk [vmem:[#allocation2 + $0xf0] sm:$0xff] %vm380, %v374
        %412 = vst.msk [vmem:[#allocation2 + $0xf8] sm:$0xff] %vm380, %v375
        %413 = vst.msk [vmem:[#allocation2 + $0x100] sm:$0xff] %vm380, %v376
        %414 = vst.msk [vmem:[#allocation2 + $0x108] sm:$0xff] %vm380, %v377
        %415 = vst.msk [vmem:[#allocation2 + $0x110] sm:$0xff] %vm380, %v378
        %416 = vst.msk [vmem:[#allocation2 + $0x118] sm:$0xff] %vm380, %v379
      $region36: #{inception_forward.7} parent=31 // pred_fallthru
        _
      %s417 = smul.u32 %s19, 8
      %s418 = smul.u32 %s417, 16
      %s419 = scalar_lea.vmem [#allocation2], %s418
      %v420 = vld [vmem:[%s419] sm:$0xff]
      %v421 = vld [vmem:[%s419 + $0x8] sm:$0xff]
      %v422 = vld [vmem:[%s419 + $0x10] sm:$0xff]
      %v423 = vld [vmem:[%s419 + $0x18] sm:$0xff]
      %v424 = vld [vmem:[%s419 + $0x20] sm:$0xff]
      %v425 = vld [vmem:[%s419 + $0x28] sm:$0xff]
      %v426 = vld [vmem:[%s419 + $0x30] sm:$0xff]
      %v427 = vld [vmem:[%s419 + $0x38] sm:$0xff]
      %v428 = vld [vmem:[%s419 + $0x40] sm:$0xff]
      %v429 = vld [vmem:[%s419 + $0x48] sm:$0xff]
      %v430 = vld [vmem:[%s419 + $0x50] sm:$0xff]
      %v431 = vld [vmem:[%s419 + $0x58] sm:$0xff]
      %v432 = vld [vmem:[%s419 + $0x60] sm:$0xff]
      %v433 = vld [vmem:[%s419 + $0x68] sm:$0xff]
      %v434 = vld [vmem:[%s419 + $0x70] sm:$0xff]
      %v435 = vld [vmem:[%s419 + $0x78] sm:$0xff]
      %s436 = sadd.s32 %s417, 1
      %s437 = smul.u32 %s436, 16
      %s438 = scalar_lea.vmem [#allocation2], %s437
      %v439 = vld [vmem:[%s438] sm:$0xff]
      %v440 = vld [vmem:[%s438 + $0x8] sm:$0xff]
      %v441 = vld [vmem:[%s438 + $0x10] sm:$0xff]
      %v442 = vld [vmem:[%s438 + $0x18] sm:$0xff]
      %v443 = vld [vmem:[%s438 + $0x20] sm:$0xff]
      %v444 = vld [vmem:[%s438 + $0x28] sm:$0xff]
      %v445 = vld [vmem:[%s438 + $0x30] sm:$0xff]
      %v446 = vld [vmem:[%s438 + $0x38] sm:$0xff]
      %v447 = vld [vmem:[%s438 + $0x40] sm:$0xff]
      %v448 = vld [vmem:[%s438 + $0x48] sm:$0xff]
      %v449 = vld [vmem:[%s438 + $0x50] sm:$0xff]
      %v450 = vld [vmem:[%s438 + $0x58] sm:$0xff]
      %v451 = vld [vmem:[%s438 + $0x60] sm:$0xff]
      %v452 = vld [vmem:[%s438 + $0x68] sm:$0xff]
      %v453 = vld [vmem:[%s438 + $0x70] sm:$0xff]
      %v454 = vld [vmem:[%s438 + $0x78] sm:$0xff]
      %v455 = vmax.f32 %v420, %v439
      %v456 = vmax.f32 %v421, %v440
      %v457 = vmax.f32 %v422, %v441
      %v458 = vmax.f32 %v423, %v442
      %v459 = vmax.f32 %v424, %v443
      %v460 = vmax.f32 %v425, %v444
      %v461 = vmax.f32 %v426, %v445
      %v462 = vmax.f32 %v427, %v446
      %v463 = vmax.f32 %v428, %v447
      %v464 = vmax.f32 %v429, %v448
      %v465 = vmax.f32 %v430, %v449
      %v466 = vmax.f32 %v431, %v450
      %v467 = vmax.f32 %v432, %v451
      %v468 = vmax.f32 %v433, %v452
      %v469 = vmax.f32 %v434, %v453
      %v470 = vmax.f32 %v435, %v454
      %s471 = sadd.s32 %s417, 2
      %s472 = smul.u32 %s471, 16
      %s473 = scalar_lea.vmem [#allocation2], %s472
      %v474 = vld [vmem:[%s473] sm:$0xff]
      %v475 = vld [vmem:[%s473 + $0x8] sm:$0xff]
      %v476 = vld [vmem:[%s473 + $0x10] sm:$0xff]
      %v477 = vld [vmem:[%s473 + $0x18] sm:$0xff]
      %v478 = vld [vmem:[%s473 + $0x20] sm:$0xff]
      %v479 = vld [vmem:[%s473 + $0x28] sm:$0xff]
      %v480 = vld [vmem:[%s473 + $0x30] sm:$0xff]
      %v481 = vld [vmem:[%s473 + $0x38] sm:$0xff]
      %v482 = vld [vmem:[%s473 + $0x40] sm:$0xff]
      %v483 = vld [vmem:[%s473 + $0x48] sm:$0xff]
      %v484 = vld [vmem:[%s473 + $0x50] sm:$0xff]
      %v485 = vld [vmem:[%s473 + $0x58] sm:$0xff]
      %v486 = vld [vmem:[%s473 + $0x60] sm:$0xff]
      %v487 = vld [vmem:[%s473 + $0x68] sm:$0xff]
      %v488 = vld [vmem:[%s473 + $0x70] sm:$0xff]
      %v489 = vld [vmem:[%s473 + $0x78] sm:$0xff]
      %v490 = vmax.f32 %v455, %v474
      %v491 = vmax.f32 %v456, %v475
      %v492 = vmax.f32 %v457, %v476
      %v493 = vmax.f32 %v458, %v477
      %v494 = vmax.f32 %v459, %v478
      %v495 = vmax.f32 %v460, %v479
      %v496 = vmax.f32 %v461, %v480
      %v497 = vmax.f32 %v462, %v481
      %v498 = vmax.f32 %v463, %v482
      %v499 = vmax.f32 %v464, %v483
      %v500 = vmax.f32 %v465, %v484
      %v501 = vmax.f32 %v466, %v485
      %v502 = vmax.f32 %v467, %v486
      %v503 = vmax.f32 %v468, %v487
      %v504 = vmax.f32 %v469, %v488
      %v505 = vmax.f32 %v470, %v489
      %v506 = vld [vmem:[%s1] sm:$0xf]
      %v507 = vld [vmem:[%s2] sm:$0x1]
      %v509 = vperm.slane %v507, 0
      %vm511 = vcmask 31744
      %v513 = vsel %vm511, %v490, 0
      %v516 = vsel %vm511, %v491, 0
      %v519 = vsel %vm511, %v492, 0
      %v522 = vsel %vm511, %v493, 0
      %v525 = vsel %vm511, %v494, 0
      %v528 = vsel %vm511, %v495, 0
      %v531 = vsel %vm511, %v496, 0
      %v534 = vsel %vm511, %v497, 0
      %v537 = vsel %vm511, %v498, 0
      %v540 = vsel %vm511, %v499, 0
      %v543 = vsel %vm511, %v500, 0
      %v546 = vsel %vm511, %v501, 0
      %v549 = vsel %vm511, %v502, 0
      %v552 = vsel %vm511, %v503, 0
      %v555 = vsel %vm511, %v504, 0
      %v558 = vsel %vm511, %v505, 0
      %vm560 = vcmask 1043456
      %v562 = vsel %vm560, %v506, 0
      %564 = vmatpush.msra.mxu0 0.0
      %565 = vmatpush.msra.mxu0 0.0
      %566 = vmatpush.msra.mxu0 0.0
      %567 = vmatpush.msra.mxu0 0.0
      %568 = vmatpush.msra.mxu0 0.0
      %569 = vmatpush.msra.mxu0 0.0
      %570 = vmatpush.msra.mxu0 0.0
      %571 = vmatpush.msra.mxu0 0.0
      %572 = vmatpush.msra.mxu0 0.0
      %573 = vmatpush.msra.mxu0 0.0
      %574 = vmatpush.msra.mxu0 0.0
      %575 = vmatpush.msra.mxu0 0.0
      %576 = vmatpush.msra.mxu0 0.0
      %577 = vmatpush.msra.mxu0 0.0
      %578 = vmatpush.msra.mxu0 0.0
      %579 = vmatpush.msra.mxu0 %v562
      %580 = vmatmul.f32.gmra.mxu0 %v513
      %v581 = vpop.f32.mrf.mxu0
      %v582 = vadd.f32 %v509, %v581
      %583 = vmatmul.f32.gmra.mxu0 %v516
      %v584 = vpop.f32.mrf.mxu0
      %v585 = vadd.f32 %v509, %v584
      %586 = vmatmul.f32.gmra.mxu0 %v519
      %v587 = vpop.f32.mrf.mxu0
      %v588 = vadd.f32 %v509, %v587
      %589 = vmatmul.f32.gmra.mxu0 %v522
      %v590 = vpop.f32.mrf.mxu0
      %v591 = vadd.f32 %v509, %v590
      %592 = vmatmul.f32.gmra.mxu0 %v525
      %v593 = vpop.f32.mrf.mxu0
      %v594 = vadd.f32 %v509, %v593
      %595 = vmatmul.f32.gmra.mxu0 %v528
      %v596 = vpop.f32.mrf.mxu0
      %v597 = vadd.f32 %v509, %v596
      %598 = vmatmul.f32.gmra.mxu0 %v531
      %v599 = vpop.f32.mrf.mxu0
      %v600 = vadd.f32 %v509, %v599
      %601 = vmatmul.f32.gmra.mxu0 %v534
      %v602 = vpop.f32.mrf.mxu0
      %v603 = vadd.f32 %v509, %v602
      %604 = vmatmul.f32.gmra.mxu0 %v537
      %v605 = vpop.f32.mrf.mxu0
      %v606 = vadd.f32 %v509, %v605
      %607 = vmatmul.f32.gmra.mxu0 %v540
      %v608 = vpop.f32.mrf.mxu0
      %v609 = vadd.f32 %v509, %v608
      %610 = vmatmul.f32.gmra.mxu0 %v543
      %v611 = vpop.f32.mrf.mxu0
      %v612 = vadd.f32 %v509, %v611
      %613 = vmatmul.f32.gmra.mxu0 %v546
      %v614 = vpop.f32.mrf.mxu0
      %v615 = vadd.f32 %v509, %v614
      %616 = vmatmul.f32.gmra.mxu0 %v549
      %v617 = vpop.f32.mrf.mxu0
      %v618 = vadd.f32 %v509, %v617
      %619 = vmatmul.f32.gmra.mxu0 %v552
      %v620 = vpop.f32.mrf.mxu0
      %v621 = vadd.f32 %v509, %v620
      %622 = vmatmul.f32.gmra.mxu0 %v555
      %v623 = vpop.f32.mrf.mxu0
      %v624 = vadd.f32 %v509, %v623
      %625 = vmatmul.f32.gmra.mxu0 %v558
      %v626 = vpop.f32.mrf.mxu0
      %v627 = vadd.f32 %v509, %v626
      %628 = vdwg.mxu0
      %v629 = vmax.f32 %v582, 0.0
      %v630 = vmax.f32 %v585, 0.0
      %v631 = vmax.f32 %v588, 0.0
      %v632 = vmax.f32 %v591, 0.0
      %v633 = vmax.f32 %v594, 0.0
      %v634 = vmax.f32 %v597, 0.0
      %v635 = vmax.f32 %v600, 0.0
      %v636 = vmax.f32 %v603, 0.0
      %v637 = vmax.f32 %v606, 0.0
      %v638 = vmax.f32 %v609, 0.0
      %v639 = vmax.f32 %v612, 0.0
      %v640 = vmax.f32 %v615, 0.0
      %v641 = vmax.f32 %v618, 0.0
      %v642 = vmax.f32 %v621, 0.0
      %v643 = vmax.f32 %v624, 0.0
      %v644 = vmax.f32 %v627, 0.0
      %vm645 = vcmask 64512
      %646 = vst.msk [vmem:[%s194] sm:$0xff] %vm645, %v629
      %647 = vst.msk [vmem:[%s194 + $0x8] sm:$0xff] %vm645, %v630
      %648 = vst.msk [vmem:[%s194 + $0x10] sm:$0xff] %vm645, %v631
      %649 = vst.msk [vmem:[%s194 + $0x18] sm:$0xff] %vm645, %v632
      %650 = vst.msk [vmem:[%s194 + $0x20] sm:$0xff] %vm645, %v633
      %651 = vst.msk [vmem:[%s194 + $0x28] sm:$0xff] %vm645, %v634
      %652 = vst.msk [vmem:[%s194 + $0x30] sm:$0xff] %vm645, %v635
      %653 = vst.msk [vmem:[%s194 + $0x38] sm:$0xff] %vm645, %v636
      %654 = vst.msk [vmem:[%s194 + $0x40] sm:$0xff] %vm645, %v637
      %655 = vst.msk [vmem:[%s194 + $0x48] sm:$0xff] %vm645, %v638
      %656 = vst.msk [vmem:[%s194 + $0x50] sm:$0xff] %vm645, %v639
      %657 = vst.msk [vmem:[%s194 + $0x58] sm:$0xff] %vm645, %v640
      %658 = vst.msk [vmem:[%s194 + $0x60] sm:$0xff] %vm645, %v641
      %659 = vst.msk [vmem:[%s194 + $0x68] sm:$0xff] %vm645, %v642
      %660 = vst.msk [vmem:[%s194 + $0x70] sm:$0xff] %vm645, %v643
      %661 = vst.msk [vmem:[%s194 + $0x78] sm:$0xff] %vm645, %v644
      %s662 = smul.u32 8, %s19
      %p663 = scmp.lt.s32.totalorder %s18, 1
      %s664 = scalar_select %p663, %s18, 1
      %p665 = scmp.lt.s32.totalorder %s662, 15
      %s666 = scalar_select %p665, %s662, 15
      %s667 = smul.addr %s666, 2
      %s668 = smul.addr %s664, 32
      %s669 = sadd.s32 %s667, %s668
      %s670 = smul.addr %s669, 8
      %s671 = scalar_lea.vmem %s3, %s670
      // Predicated region
      $region37: #{inception_forward.7} parent=31 // pred_check
        %p672 = pneg %p114
      $region38: #{inception_forward.7} parent=31 // pred_check_branch
        %674 = sbr.rel (%p672) target = $region40
      $region39: #{inception_forward.7} parent=31 // pred_region
        %s675 = smul.u32 8, %s19
      $region40: #{inception_forward.7} parent=31 // pred_fallthru
        _
    $region32: #{inception_forward.7} parent=5 // pred_fallthru
      _
    %p676 = scmp.le.s32.totalorder 2, %s9
    // Predicated region
    $region41: #{inception_forward.7} parent=5 // pred_check
      %p677 = pneg %p676
    $region42: #{inception_forward.7} parent=5 // pred_check_branch
      %679 = sbr.rel (%p677) target = $region44
    $region43: #{inception_forward.7} parent=5 // pred_region
      %s680 = ssub.s32 %s9, 2
      // Predicated region
      $region45: #{inception_forward.7} parent=43 // pred_check
        %p681 = pneg %p120
      $region46: #{inception_forward.7} parent=43 // pred_check_branch
        %683 = sbr.rel (%p681) target = $region48
      $region47: #{inception_forward.7} parent=43 // pred_region
        %s684 = smul.u32 8, %s21
        %p685 = scmp.lt.s32.totalorder %s20, 1
        %s686 = scalar_select %p685, %s20, 1
        %p687 = scmp.lt.s32.totalorder %s684, 15
        %s688 = scalar_select %p687, %s684, 15
        %s689 = smul.addr %s688, 2
        %s690 = smul.addr %s686, 32
        %s691 = sadd.s32 %s689, %s690
        %s692 = smul.addr %s691, 8
        %s693 = scalar_lea.vmem %s3, %s692
      $region48: #{inception_forward.7} parent=43 // pred_fallthru
        _
    $region44: #{inception_forward.7} parent=5 // pred_fallthru
      _
  $region6: #{inception_forward.7} parent=0 // loop_footer
    %s13 = sadd.s32 1, %s9
  $region7: #{inception_forward.7} parent=0 // loop_footer_branch
    %8 = sbr.rel target = $region3
  $region8: #{inception_forward.7} parent=0 // loop_exit
    _

</llo_original>
